<compile_context>
chip_gen: v7x
topology: tpu7x:2x2x1
jax: 0.10.0
libtpu: 0.0.40
codegen_flags: <defaults>
</compile_context>

<pallas_src>
import math

import numpy as np
import jax
import jax.numpy as jnp
from jax.experimental import pallas as pl
from jax.experimental.pallas import tpu as pltpu


# ---------------------------------------------------------------------------
# Host-side constant matrices (numpy float64 for exact accumulation)
# ---------------------------------------------------------------------------
def _linear_interp_matrix(L, frame_size):
    """W[L, T] with f0_upsampled = f0 @ W  (F.interpolate, mode='linear',
    align_corners=False)."""
    T = L * frame_size
    W = np.zeros((L, T), np.float64)
    inv_scale = 1.0 / float(frame_size)
    for j in range(T):
        x = (j + 0.5) * inv_scale - 0.5
        if x < 0.0:
            x = 0.0
        i0 = min(int(np.floor(x)), L - 1)
        i1 = min(i0 + 1, L - 1)
        w1 = x - i0
        W[i0, j] += 1.0 - w1
        W[i1, j] += w1
    return W


def _nearest_interp_matrix(L, frame_size):
    """W[L, T] with uv_upsampled = uv @ W  (F.interpolate, mode='nearest')."""
    T = L * frame_size
    W = np.zeros((L, T), np.float64)
    for j in range(T):
        W[min(j // frame_size, L - 1), j] = 1.0
    return W


def _phase_matrix(L, frame_size, sample_rate):
    """Wcum[L, T] such that f0 @ Wcum == cumsum(upsample_linear(f0) / sr, axis=-1).

    Folds the linear upsample, the 1/sample_rate scaling and the cumulative
    sum into one [L, T] operand -> removes the T x T triangular matmul."""
    Wlin = _linear_interp_matrix(L, frame_size)            # float64
    return np.cumsum(Wlin, axis=1) / float(sample_rate)    # == Wlin @ triu(1s) / sr


def _round_up(x, m):
    return ((x + m - 1) // m) * m


# ---------------------------------------------------------------------------
# Pallas kernel
# ---------------------------------------------------------------------------
def _make_harmonic_kernel(num_harmonics, noise_scale):
    two_pi = 2.0 * math.pi
    two_scale = 2.0 * float(noise_scale)

    def kernel(f0_ref, uv_ref, wcum_ref, wnn_ref, noise_ref,
               phi_ref, wnorm_ref, out_ref):
        # Fundamental phase for this time tile: cumsum(f0_up / sr) via the
        # folded [N, L] x [L, TT] matmul.  Default MXU precision (see header).
        phase1 = jnp.dot(f0_ref[...], wcum_ref[...],
                         preferred_element_type=jnp.float32)      # [N, TT]
        # Nearest-neighbor upsampled voiced mask (exact 0/1).
        vmask = jnp.dot(uv_ref[...], wnn_ref[...],
                        preferred_element_type=jnp.float32)       # [N, TT]

        acc = None
        for h in range(num_harmonics):                            # static unroll (H small)
            integ = phase1 * float(h + 1)          # cumsum(f0 * (h+1) / sr)
            x = integ + phi_ref[h]                 # + random phase (scalar, SMEM)
            rad = two_pi * (x - jnp.floor(x))      # 2*pi * (x % 1)
            nz = noise_ref[h]                      # [N, TT]  ~ N(0, 1)
            # harmonics = sin(rad)*vmask + noise*scale ; voiced = harmonics + noise*scale
            voiced = jnp.sin(rad) * vmask + two_scale * nz
            unvoiced = 0.333 * nz
            # voiced*vmask + unvoiced*(1-vmask), folded to save one multiply
            src = unvoiced + vmask * (voiced - unvoiced)
            term = wnorm_ref[h] * src              # L2-normalized harmonic weight
            acc = term if acc is None else acc + term

        out_ref[...] = acc

    return kernel


# ---------------------------------------------------------------------------
# Wrapper
# ---------------------------------------------------------------------------
def harmonic_noise_oscillator(f0, uv, weights, key, *, sample_rate, frame_size,
                              num_harmonics=1, noise_scale=0.03, time_tile=512):
    """f0, uv: [N, 1, L] float32; weights: module parameter [1, H, 1];
    key: jax PRNG key (for phi and the noise stream).
    Returns source: [N, 1, L * frame_size] float32."""
    N, C, L = f0.shape
    assert C == 1
    H = int(num_harmonics)
    T = L * frame_size

    # Lane-dense time tiles (multiples of 128); pad T if needed.
    TT = max(128, (min(int(time_tile), _round_up(T, 128)) // 128) * 128)
    Tp = _round_up(T, TT)
    n_tiles = Tp // TT

    # Host constants (float64 -> f32), padded along time with zeros.
    Wcum = _phase_matrix(L, frame_size, sample_rate)
    Wnn = _nearest_interp_matrix(L, frame_size)
    if Tp > T:
        pad = ((0, 0), (0, Tp - T))
        Wcum = np.pad(Wcum, pad)
        Wnn = np.pad(Wnn, pad)
    wcum = jnp.asarray(Wcum, dtype=jnp.float32)
    wnn = jnp.asarray(Wnn, dtype=jnp.float32)

    # Random phase per harmonic and Gaussian noise (jax RNG; torch stream
    # is not reproducible).
    kphi, knoise = jax.random.split(key)
    phi = jax.random.uniform(kphi, (H,), jnp.float32)
    noise = jax.random.normal(knoise, (H, N, Tp), jnp.float32)

    # F.normalize(weights, p=2, dim=1): w / max(||w||_2, eps) over harmonics.
    w = jnp.asarray(weights, jnp.float32).reshape(1, H, 1)
    norm = jnp.sqrt(jnp.sum(w * w, axis=1, keepdims=True))
    wnorm = (w / jnp.maximum(norm, 1e-12)).reshape(H)

    f0_2d = f0.reshape(N, L).astype(jnp.float32)
    uv_2d = uv.reshape(N, L).astype(jnp.float32)

    out = pl.pallas_call(
        _make_harmonic_kernel(H, noise_scale),
        out_shape=jax.ShapeDtypeStruct((N, Tp), jnp.float32),
        grid=(n_tiles,),
        in_specs=[
            pl.BlockSpec((N, L), lambda j: (0, 0)),            # f0 (resident)
            pl.BlockSpec((N, L), lambda j: (0, 0)),            # uv (resident)
            pl.BlockSpec((L, TT), lambda j: (0, j)),           # Wcum time tile
            pl.BlockSpec((L, TT), lambda j: (0, j)),           # Wnn  time tile
            pl.BlockSpec((H, N, TT), lambda j: (0, 0, j)),     # noise time tile
            pl.BlockSpec(memory_space=pltpu.MemorySpace.SMEM),  # phi   [H]
            pl.BlockSpec(memory_space=pltpu.MemorySpace.SMEM),  # wnorm [H]
        ],
        out_specs=pl.BlockSpec((N, TT), lambda j: (0, j)),
        compiler_params=pltpu.CompilerParams(
            dimension_semantics=("parallel",)),                 # megacore over time tiles
    )(f0_2d, uv_2d, wcum, wnn, noise, phi, wnorm)

    return out[:, :T].reshape(N, 1, T)


# ---------------------------------------------------------------------------
if __name__ == "__main__":
    sample_rate = 16000
    frame_size = 16
    num_harmonics = 2
    noise_scale = 0.03
    N, L = 2, 64
    T = L * frame_size                      # 1024 samples -> 2 time tiles of 512

    key = jax.random.PRNGKey(0)
    k1, k2, k3 = jax.random.split(key, 3)
    f0 = jax.random.uniform(k1, (N, 1, L), jnp.float32, 80.0, 400.0)
    uv = (jax.random.uniform(k2, (N, 1, L)) > 0.5).astype(jnp.float32)
    weights = jnp.ones((1, num_harmonics, 1), jnp.float32)   # nn.Parameter init

    out = harmonic_noise_oscillator(
        f0, uv, weights, k3,
        sample_rate=sample_rate, frame_size=frame_size,
        num_harmonics=num_harmonics, noise_scale=noise_scale,
        time_tile=512)
    jax.block_until_ready(out)
    assert out.shape == (N, 1, T) and out.dtype == jnp.float32
    print("KERNEL_OK")
</pallas_src>

<mosaic_0001>
module attributes {stable_mosaic.version = 11 : i64} {
  func.func @kernel(%arg0: i32, %arg1: memref<2x64xf32, #tpu.memory_space<vmem>>, %arg2: memref<2x64xf32, #tpu.memory_space<vmem>>, %arg3: memref<64x512xf32, #tpu.memory_space<vmem>>, %arg4: memref<64x512xf32, #tpu.memory_space<vmem>>, %arg5: memref<2x2x512xf32, #tpu.memory_space<vmem>>, %arg6: memref<2xf32, #tpu.memory_space<smem>>, %arg7: memref<2xf32, #tpu.memory_space<smem>>, %arg8: memref<2x512xf32, #tpu.memory_space<vmem>>) attributes {dimension_semantics = [#tpu.dimension_semantics<parallel>], iteration_bounds = array<i64: 2>, scalar_prefetch = 0 : i64, scratch_operands = 0 : i64, tpu.core_type = #tpu.core_type<tc>, window_params = [{pipeline_mode = #tpu.pipeline_mode<synchronous>, transform_indices = @transform_0, window_bounds = array<i64: 2, 64>}, {pipeline_mode = #tpu.pipeline_mode<synchronous>, transform_indices = @transform_1, window_bounds = array<i64: 2, 64>}, {transform_indices = @transform_2, window_bounds = array<i64: 64, 512>}, {transform_indices = @transform_3, window_bounds = array<i64: 64, 512>}, {transform_indices = @transform_4, window_bounds = array<i64: 2, 2, 512>}, {transform_indices = @transform_5, window_bounds = array<i64: 2>}, {transform_indices = @transform_6, window_bounds = array<i64: 2>}, {transform_indices = @transform_7, window_bounds = array<i64: 2, 512>}]} {
    %c0 = arith.constant 0 : index
    %c0_0 = arith.constant 0 : index
    %0 = vector.load %arg1[%c0, %c0_0] : memref<2x64xf32, #tpu.memory_space<vmem>>, vector<2x64xf32>
    %c0_1 = arith.constant 0 : index
    %c0_2 = arith.constant 0 : index
    %1 = vector.load %arg3[%c0_1, %c0_2] : memref<64x512xf32, #tpu.memory_space<vmem>>, vector<64x512xf32>
    %cst = arith.constant dense<0.000000e+00> : vector<2x512xf32>
    %2 = tpu.matmul %0, %1, %cst {dimension_numbers = #tpu.dot_dimension_numbers<[1], [0], [0], [1], [0, 0, 1, 1], [], []>} : vector<2x64xf32>, vector<64x512xf32>, vector<2x512xf32> -> vector<2x512xf32>
    %c0_3 = arith.constant 0 : index
    %c0_4 = arith.constant 0 : index
    %3 = vector.load %arg2[%c0_3, %c0_4] : memref<2x64xf32, #tpu.memory_space<vmem>>, vector<2x64xf32>
    %c0_5 = arith.constant 0 : index
    %c0_6 = arith.constant 0 : index
    %4 = vector.load %arg4[%c0_5, %c0_6] : memref<64x512xf32, #tpu.memory_space<vmem>>, vector<64x512xf32>
    %cst_7 = arith.constant dense<0.000000e+00> : vector<2x512xf32>
    %5 = tpu.matmul %3, %4, %cst_7 {dimension_numbers = #tpu.dot_dimension_numbers<[1], [0], [0], [1], [0, 0, 1, 1], [], []>} : vector<2x64xf32>, vector<64x512xf32>, vector<2x512xf32> -> vector<2x512xf32>
    %cst_8 = arith.constant 1.000000e+00 : f32
    %6 = vector.broadcast %cst_8 : f32 to vector<2x512xf32>
    %7 = arith.mulf %2, %6 : vector<2x512xf32>
    %c0_9 = arith.constant 0 : index
    %8 = memref.load %arg6[%c0_9] : memref<2xf32, #tpu.memory_space<smem>>
    %9 = vector.broadcast %8 : f32 to vector<2x512xf32>
    %10 = arith.addf %7, %9 : vector<2x512xf32>
    %11 = math.floor %10 : vector<2x512xf32>
    %12 = arith.subf %10, %11 : vector<2x512xf32>
    %cst_10 = arith.constant 6.28318548 : f32
    %13 = vector.broadcast %cst_10 : f32 to vector<2x512xf32>
    %14 = arith.mulf %13, %12 : vector<2x512xf32>
    %c0_11 = arith.constant 0 : index
    %c0_12 = arith.constant 0 : index
    %c0_13 = arith.constant 0 : index
    %15 = vector.load %arg5[%c0_11, %c0_12, %c0_13] : memref<2x2x512xf32, #tpu.memory_space<vmem>>, vector<1x2x512xf32>
    %16 = vector.shape_cast %15 : vector<1x2x512xf32> to vector<2x512xf32>
    %17 = math.sin %14 : vector<2x512xf32>
    %18 = arith.mulf %17, %5 : vector<2x512xf32>
    %cst_14 = arith.constant 6.000000e-02 : f32
    %19 = vector.broadcast %cst_14 : f32 to vector<2x512xf32>
    %20 = arith.mulf %19, %16 : vector<2x512xf32>
    %21 = arith.addf %18, %20 : vector<2x512xf32>
    %cst_15 = arith.constant 3.330000e-01 : f32
    %22 = vector.broadcast %cst_15 : f32 to vector<2x512xf32>
    %23 = arith.mulf %22, %16 : vector<2x512xf32>
    %24 = arith.subf %21, %23 : vector<2x512xf32>
    %25 = arith.mulf %5, %24 : vector<2x512xf32>
    %26 = arith.addf %23, %25 : vector<2x512xf32>
    %c0_16 = arith.constant 0 : index
    %27 = memref.load %arg7[%c0_16] : memref<2xf32, #tpu.memory_space<smem>>
    %28 = vector.broadcast %27 : f32 to vector<2x512xf32>
    %29 = arith.mulf %28, %26 : vector<2x512xf32>
    %cst_17 = arith.constant 2.000000e+00 : f32
    %30 = vector.broadcast %cst_17 : f32 to vector<2x512xf32>
    %31 = arith.mulf %2, %30 : vector<2x512xf32>
    %c1 = arith.constant 1 : index
    %32 = memref.load %arg6[%c1] : memref<2xf32, #tpu.memory_space<smem>>
    %33 = vector.broadcast %32 : f32 to vector<2x512xf32>
    %34 = arith.addf %31, %33 : vector<2x512xf32>
    %35 = math.floor %34 : vector<2x512xf32>
    %36 = arith.subf %34, %35 : vector<2x512xf32>
    %cst_18 = arith.constant 6.28318548 : f32
    %37 = vector.broadcast %cst_18 : f32 to vector<2x512xf32>
    %38 = arith.mulf %37, %36 : vector<2x512xf32>
    %c1_19 = arith.constant 1 : index
    %c0_20 = arith.constant 0 : index
    %c0_21 = arith.constant 0 : index
    %39 = vector.load %arg5[%c1_19, %c0_20, %c0_21] : memref<2x2x512xf32, #tpu.memory_space<vmem>>, vector<1x2x512xf32>
    %40 = vector.shape_cast %39 : vector<1x2x512xf32> to vector<2x512xf32>
    %41 = math.sin %38 : vector<2x512xf32>
    %42 = arith.mulf %41, %5 : vector<2x512xf32>
    %cst_22 = arith.constant 6.000000e-02 : f32
    %43 = vector.broadcast %cst_22 : f32 to vector<2x512xf32>
    %44 = arith.mulf %43, %40 : vector<2x512xf32>
    %45 = arith.addf %42, %44 : vector<2x512xf32>
    %cst_23 = arith.constant 3.330000e-01 : f32
    %46 = vector.broadcast %cst_23 : f32 to vector<2x512xf32>
    %47 = arith.mulf %46, %40 : vector<2x512xf32>
    %48 = arith.subf %45, %47 : vector<2x512xf32>
    %49 = arith.mulf %5, %48 : vector<2x512xf32>
    %50 = arith.addf %47, %49 : vector<2x512xf32>
    %c1_24 = arith.constant 1 : index
    %51 = memref.load %arg7[%c1_24] : memref<2xf32, #tpu.memory_space<smem>>
    %52 = vector.broadcast %51 : f32 to vector<2x512xf32>
    %53 = arith.mulf %52, %50 : vector<2x512xf32>
    %54 = arith.addf %29, %53 : vector<2x512xf32>
    %c0_25 = arith.constant 0 : index
    %c0_26 = arith.constant 0 : index
    %55 = vector.load %arg8[%c0_25, %c0_26] : memref<2x512xf32, #tpu.memory_space<vmem>>, vector<2x512xf32>
    tpu.vector_store %arg8[%c0_25, %c0_26], %54 {strides = array<i32>} : memref<2x512xf32, #tpu.memory_space<vmem>>, vector<2x512xf32>,
    return
  }
  func.func @transform_0(%arg0: i32) -> (i32, i32) {
    %c0_i32 = arith.constant 0 : i32
    %c0_i32_0 = arith.constant 0 : i32
    %c0_i32_1 = arith.constant 0 : i32
    return %c0_i32, %c0_i32_0 : i32, i32
  }
  func.func @transform_1(%arg0: i32) -> (i32, i32) {
    %c0_i32 = arith.constant 0 : i32
    %c0_i32_0 = arith.constant 0 : i32
    %c0_i32_1 = arith.constant 0 : i32
    return %c0_i32, %c0_i32_0 : i32, i32
  }
  func.func @transform_2(%arg0: i32) -> (i32, i32) {
    %c0_i32 = arith.constant 0 : i32
    %c0_i32_0 = arith.constant 0 : i32
    return %c0_i32, %arg0 : i32, i32
  }
  func.func @transform_3(%arg0: i32) -> (i32, i32) {
    %c0_i32 = arith.constant 0 : i32
    %c0_i32_0 = arith.constant 0 : i32
    return %c0_i32, %arg0 : i32, i32
  }
  func.func @transform_4(%arg0: i32) -> (i32, i32, i32) {
    %c0_i32 = arith.constant 0 : i32
    %c0_i32_0 = arith.constant 0 : i32
    %c0_i32_1 = arith.constant 0 : i32
    return %c0_i32, %c0_i32_0, %arg0 : i32, i32, i32
  }
  func.func @transform_5(%arg0: i32) -> i32 {
    %c0_i32 = arith.constant 0 : i32
    %c0_i32_0 = arith.constant 0 : i32
    return %c0_i32 : i32
  }
  func.func @transform_6(%arg0: i32) -> i32 {
    %c0_i32 = arith.constant 0 : i32
    %c0_i32_0 = arith.constant 0 : i32
    return %c0_i32 : i32
  }
  func.func @transform_7(%arg0: i32) -> (i32, i32) {
    %c0_i32 = arith.constant 0 : i32
    %c0_i32_0 = arith.constant 0 : i32
    return %c0_i32, %arg0 : i32, i32
  }
}

</mosaic_0001>

<llo_original>
// kernel: tpu_custom_call.1
$region0: #{tpu_custom_call.1}
  #allocation0 [shape = 'u32[]', space=smem, size = 0x4, offset = 0x4, fixed_abs, tag = 'smem constant byte address 0x4 - core index']
  #allocation1 [shape = 'u32[144,128]{1,0:T(1,128)}', space=vmem, size = 0x12000, scoped, tag = 'internal scratch']
  %s0 = inlined_call_operand.hbm [shape: f32[2,64], index: 0, kind: input, shape index: {}]
  %s1 = inlined_call_operand.vmem [shape: f32[2,64], index: 1, kind: input, shape index: {}]
  %s2 = inlined_call_operand.hbm [shape: f32[64,1024], index: 2, kind: input, shape index: {}]
  %s3 = inlined_call_operand.hbm [shape: f32[64,1024], index: 3, kind: input, shape index: {}]
  %s4 = inlined_call_operand.hbm [shape: f32[2,2,1024], index: 4, kind: input, shape index: {}]
  %s5 = inlined_call_operand.vmem [shape: f32[2], index: 5, kind: input, shape index: {}]
  %s6 = inlined_call_operand.vmem [shape: f32[2], index: 6, kind: input, shape index: {}]
  %s7 = inlined_call_operand.hbm [shape: f32[2,1024], index: 7, kind: output, shape index: {}]
  %s8 = sld [smem:[#allocation0]]
  $region85: #{tpu_custom_call.1} parent=0
    _
  %s10 = ssub.s32 1, %s8
  %s11 = scalar_select 0, %s10, %s8
  $region1: #{tpu_custom_call.1} parent=0
    #allocation2 [shape = 'u8[1024]{0}', space=vmem, size = 0x400, scoped, tag = 'input window, operand 0, single buffered']
    #allocation3 [shape = 's32[2]{0}', space=sflag, size = 0x8, scoped, tag = 'scoped memory for tpu_custom_call.1']
    #allocation4 [shape = 's32[2]{0}', space=sflag, size = 0x8, scoped, tag = 'scoped memory for tpu_custom_call.1']
    #allocation5 [shape = 's32[2]{0}', space=sflag, size = 0x8, scoped, tag = 'scoped memory for tpu_custom_call.1']
    #allocation6 [shape = 'u8[262144]{0}', space=vmem, size = 0x40000, scoped, tag = 'input window, operand 2']
    #allocation7 [shape = 's32[2]{0}', space=sflag, size = 0x8, scoped, tag = 'scoped memory for tpu_custom_call.1']
    #allocation8 [shape = 'u8[262144]{0}', space=vmem, size = 0x40000, scoped, tag = 'input window, operand 3']
    #allocation9 [shape = 'u8[16384]{0}', space=vmem, size = 0x4000, scoped, tag = 'input window, operand 4']
    #allocation10 [shape = 's32[2]{0}', space=sflag, size = 0x8, scoped, tag = 'scoped memory for tpu_custom_call.1']
    #allocation11 [shape = 'u8[512]{0}', space=smem, size = 0x200, scoped, tag = 'input window, operand 5, single buffered']
    #allocation12 [shape = 'u8[512]{0}', space=smem, size = 0x200, scoped, tag = 'input window, operand 6, single buffered']
    #allocation13 [shape = 's32[1]{0}', space=sflag, size = 0x4, scoped, tag = 'scoped memory for tpu_custom_call.1']
    #allocation14 [shape = 'u8[8192]{0}', space=vmem, size = 0x2000, scoped, tag = 'output window, operand 0']
    %12 = vsyncpa [#allocation3], 0
    %13 = vsyncpa [#allocation7], 0
    %s14 = scalar_lea.sflag [#allocation7], 1
    %15 = vsyncpa %s14, 0
    %16 = vsyncpa [#allocation10], 0
    %s17 = scalar_lea.sflag [#allocation10], 1
    %18 = vsyncpa %s17, 0
    %19 = vsyncpa [#allocation5], 0
    %20 = vsyncpa [#allocation13], 0
    %21 = vsyncpa [#allocation4], 0
    %s22 = scalar_lea.sflag [#allocation4], 1
    %23 = vsyncpa %s22, 0
    loop: start=0, step=1, limit=4
    $region2: #{tpu_custom_call.1} parent=1 // loop_pre_header
      _
    $region3: #{tpu_custom_call.1} parent=1 // loop_header
      %s25 = sphi 0, %s29
      %p26 = scmp.ge.s32.totalorder %s25, 4
      %s33 = sphi 0, %s33
      %s35 = sphi 0, %s33
      %s36 = sphi 0, %s35
      %s50 = sphi 0, %s36
      %s54 = sphi 0, %s54
      %s56 = sphi 0, %s54
      %s57 = sphi 0, %s56
      %s71 = sphi 0, %s57
      %s77 = sphi 0, %s79
      %s80 = sphi 0, %s77
      %s81 = sphi 0, %s80
      %s97 = sphi 0, %s81
      %s103 = sphi 0, %s105
      %s106 = sphi 0, %s103
      %s107 = sphi 0, %s106
      %s123 = sphi 0, %s107
      %s129 = sphi 0, %s131
      %s132 = sphi 0, %s129
      %s133 = sphi 0, %s132
      %s149 = sphi 0, %s133
      %s153 = sphi 0, %s153
      %s155 = sphi 0, %s153
      %s156 = sphi 0, %s155
      %s170 = sphi 0, %s156
      %s174 = sphi 0, %s174
      %s176 = sphi 0, %s174
      %s177 = sphi 0, %s176
      %s191 = sphi 0, %s177
      %s197 = sphi 0, %s199
      %s200 = sphi 0, %s197
      %s201 = sphi 0, %s200
      %s217 = sphi 0, %s201
    $region4: #{tpu_custom_call.1} parent=1 // loop_header_branch
      %28 = sbr.rel (%p26) target = $region8
    $region5: #{tpu_custom_call.1} parent=1 // loop_body
      %s30 = ssub.s32 %s25, 1
      %s31 = ssub.s32 %s25, 2
      %s32 = sadd.s32 %s25, 1
      %s34 = sadd.s32 %s33, 1
      %p37 = scmp.eq.s32.totalorder %s25, 1
      %p38 = scmp.ne.s32.totalorder %s33, %s35
      %p39 = scmp.eq.s32.totalorder %s25, 0
      %p40 = por %p38, %p39
      %p41 = scmp.ne.s32.totalorder %s33, %s35
      %p42 = scmp.eq.s32.totalorder %s30, 1
      %p43 = por %p41, %p42
      %p44 = scmp.ne.s32.totalorder %s35, %s36
      %p45 = scmp.eq.s32.totalorder %s30, 0
      %p46 = por %p44, %p45
      %p47 = scmp.ne.s32.totalorder %s35, %s36
      %p48 = scmp.eq.s32.totalorder %s31, 1
      %p49 = por %p47, %p48
      %p51 = scmp.ne.s32.totalorder %s36, %s50
      %p52 = scmp.eq.s32.totalorder %s31, 0
      %p53 = por %p51, %p52
      %s55 = sadd.s32 %s54, 1
      %p58 = scmp.eq.s32.totalorder %s25, 1
      %p59 = scmp.ne.s32.totalorder %s54, %s56
      %p60 = scmp.eq.s32.totalorder %s25, 0
      %p61 = por %p59, %p60
      %p62 = scmp.ne.s32.totalorder %s54, %s56
      %p63 = scmp.eq.s32.totalorder %s30, 1
      %p64 = por %p62, %p63
      %p65 = scmp.ne.s32.totalorder %s56, %s57
      %p66 = scmp.eq.s32.totalorder %s30, 0
      %p67 = por %p65, %p66
      %p68 = scmp.ne.s32.totalorder %s56, %s57
      %p69 = scmp.eq.s32.totalorder %s31, 1
      %p70 = por %p68, %p69
      %p72 = scmp.ne.s32.totalorder %s57, %s71
      %p73 = scmp.eq.s32.totalorder %s31, 0
      %p74 = por %p72, %p73
      %s75 = ssub.s32 %s25, %s32
      %p76 = scmp.eq.s32.totalorder %s75, 0
      %s78 = sadd.s32 %s77, 1
      %s79 = scalar_select %p76, %s77, %s78
      %p82 = pneg %p76
      %p83 = scmp.eq.s32.totalorder %s25, 1
      %p84 = por %p82, %p83
      %p85 = scmp.ne.s32.totalorder %s77, %s80
      %p86 = scmp.eq.s32.totalorder %s25, 0
      %p87 = por %p85, %p86
      %p88 = scmp.ne.s32.totalorder %s77, %s80
      %p89 = scmp.eq.s32.totalorder %s30, 1
      %p90 = por %p88, %p89
      %p91 = scmp.ne.s32.totalorder %s80, %s81
      %p92 = scmp.eq.s32.totalorder %s30, 0
      %p93 = por %p91, %p92
      %p94 = scmp.ne.s32.totalorder %s80, %s81
      %p95 = scmp.eq.s32.totalorder %s31, 1
      %p96 = por %p94, %p95
      %p98 = scmp.ne.s32.totalorder %s81, %s97
      %p99 = scmp.eq.s32.totalorder %s31, 0
      %p100 = por %p98, %p99
      %s101 = ssub.s32 %s25, %s32
      %p102 = scmp.eq.s32.totalorder %s101, 0
      %s104 = sadd.s32 %s103, 1
      %s105 = scalar_select %p102, %s103, %s104
      %p108 = pneg %p102
      %p109 = scmp.eq.s32.totalorder %s25, 1
      %p110 = por %p108, %p109
      %p111 = scmp.ne.s32.totalorder %s103, %s106
      %p112 = scmp.eq.s32.totalorder %s25, 0
      %p113 = por %p111, %p112
      %p114 = scmp.ne.s32.totalorder %s103, %s106
      %p115 = scmp.eq.s32.totalorder %s30, 1
      %p116 = por %p114, %p115
      %p117 = scmp.ne.s32.totalorder %s106, %s107
      %p118 = scmp.eq.s32.totalorder %s30, 0
      %p119 = por %p117, %p118
      %p120 = scmp.ne.s32.totalorder %s106, %s107
      %p121 = scmp.eq.s32.totalorder %s31, 1
      %p122 = por %p120, %p121
      %p124 = scmp.ne.s32.totalorder %s107, %s123
      %p125 = scmp.eq.s32.totalorder %s31, 0
      %p126 = por %p124, %p125
      %s127 = ssub.s32 %s25, %s32
      %p128 = scmp.eq.s32.totalorder %s127, 0
      %s130 = sadd.s32 %s129, 1
      %s131 = scalar_select %p128, %s129, %s130
      %p134 = pneg %p128
      %p135 = scmp.eq.s32.totalorder %s25, 1
      %p136 = por %p134, %p135
      %p137 = scmp.ne.s32.totalorder %s129, %s132
      %p138 = scmp.eq.s32.totalorder %s25, 0
      %p139 = por %p137, %p138
      %p140 = scmp.ne.s32.totalorder %s129, %s132
      %p141 = scmp.eq.s32.totalorder %s30, 1
      %p142 = por %p140, %p141
      %p143 = scmp.ne.s32.totalorder %s132, %s133
      %p144 = scmp.eq.s32.totalorder %s30, 0
      %p145 = por %p143, %p144
      %p146 = scmp.ne.s32.totalorder %s132, %s133
      %p147 = scmp.eq.s32.totalorder %s31, 1
      %p148 = por %p146, %p147
      %p150 = scmp.ne.s32.totalorder %s133, %s149
      %p151 = scmp.eq.s32.totalorder %s31, 0
      %p152 = por %p150, %p151
      %s154 = sadd.s32 %s153, 1
      %p157 = scmp.eq.s32.totalorder %s25, 1
      %p158 = scmp.ne.s32.totalorder %s153, %s155
      %p159 = scmp.eq.s32.totalorder %s25, 0
      %p160 = por %p158, %p159
      %p161 = scmp.ne.s32.totalorder %s153, %s155
      %p162 = scmp.eq.s32.totalorder %s30, 1
      %p163 = por %p161, %p162
      %p164 = scmp.ne.s32.totalorder %s155, %s156
      %p165 = scmp.eq.s32.totalorder %s30, 0
      %p166 = por %p164, %p165
      %p167 = scmp.ne.s32.totalorder %s155, %s156
      %p168 = scmp.eq.s32.totalorder %s31, 1
      %p169 = por %p167, %p168
      %p171 = scmp.ne.s32.totalorder %s156, %s170
      %p172 = scmp.eq.s32.totalorder %s31, 0
      %p173 = por %p171, %p172
      %s175 = sadd.s32 %s174, 1
      %p178 = scmp.eq.s32.totalorder %s25, 1
      %p179 = scmp.ne.s32.totalorder %s174, %s176
      %p180 = scmp.eq.s32.totalorder %s25, 0
      %p181 = por %p179, %p180
      %p182 = scmp.ne.s32.totalorder %s174, %s176
      %p183 = scmp.eq.s32.totalorder %s30, 1
      %p184 = por %p182, %p183
      %p185 = scmp.ne.s32.totalorder %s176, %s177
      %p186 = scmp.eq.s32.totalorder %s30, 0
      %p187 = por %p185, %p186
      %p188 = scmp.ne.s32.totalorder %s176, %s177
      %p189 = scmp.eq.s32.totalorder %s31, 1
      %p190 = por %p188, %p189
      %p192 = scmp.ne.s32.totalorder %s177, %s191
      %p193 = scmp.eq.s32.totalorder %s31, 0
      %p194 = por %p192, %p193
      %s195 = ssub.s32 %s25, %s32
      %p196 = scmp.eq.s32.totalorder %s195, 0
      %s198 = sadd.s32 %s197, 1
      %s199 = scalar_select %p196, %s197, %s198
      %p202 = pneg %p196
      %p203 = scmp.eq.s32.totalorder %s25, 1
      %p204 = por %p202, %p203
      %p205 = scmp.ne.s32.totalorder %s197, %s200
      %p206 = scmp.eq.s32.totalorder %s25, 0
      %p207 = por %p205, %p206
      %p208 = scmp.ne.s32.totalorder %s197, %s200
      %p209 = scmp.eq.s32.totalorder %s30, 1
      %p210 = por %p208, %p209
      %p211 = scmp.ne.s32.totalorder %s200, %s201
      %p212 = scmp.eq.s32.totalorder %s30, 0
      %p213 = por %p211, %p212
      %p214 = scmp.ne.s32.totalorder %s200, %s201
      %p215 = scmp.eq.s32.totalorder %s31, 1
      %p216 = por %p214, %p215
      %p218 = scmp.ne.s32.totalorder %s201, %s217
      %p219 = scmp.eq.s32.totalorder %s31, 0
      %p220 = por %p218, %p219
      %p221 = scmp.le.s32.totalorder 1, %s25
      %p222 = scmp.lt.s32.totalorder %s25, 3
      %p223 = pnand %p221, %p222
      %p224 = pneg %p223
      // Predicated region
      $region9: #{tpu_custom_call.1} parent=5 // pred_check
        _
      $region10: #{tpu_custom_call.1} parent=5 // pred_check_branch
        %226 = sbr.rel (%p223) target = $region12
      $region11: #{tpu_custom_call.1} parent=5 // pred_region
        %s227 = ssub.s32 %s25, 1
        // Predicated region
        $region13: #{tpu_custom_call.1} parent=11 // pred_check
          %p228 = pneg %p46
        $region14: #{tpu_custom_call.1} parent=11 // pred_check_branch
          %230 = sbr.rel (%p228) target = $region16
        $region15: #{tpu_custom_call.1} parent=11 // pred_region
          %s232 = ssub.s32 32, 32
          %233 = vsyncadd [#allocation3], %s232
          %s235 = sshll.u32 [#allocation2], 4
          %s236 = int_to_ptr.vmem [resolvable:$true] %s235
          %238 = dma.hbm_to_vmem [thread:$0]  %s0, 32, %s236, [#allocation3]
        $region16: #{tpu_custom_call.1} parent=11 // pred_fallthru
          _
        // Predicated region
        $region17: #{tpu_custom_call.1} parent=11 // pred_check
          %p239 = pneg %p67
        $region18: #{tpu_custom_call.1} parent=11 // pred_check_branch
          %241 = sbr.rel (%p239) target = $region20
        $region19: #{tpu_custom_call.1} parent=11 // pred_region
          _
        $region20: #{tpu_custom_call.1} parent=11 // pred_fallthru
          _
        // Predicated region
        $region21: #{tpu_custom_call.1} parent=11 // pred_check
          %p242 = pneg %p166
        $region22: #{tpu_custom_call.1} parent=11 // pred_check_branch
          %244 = sbr.rel (%p242) target = $region24
        $region23: #{tpu_custom_call.1} parent=11 // pred_region
          %s246 = ssub.s32 16, 16
          %247 = vsyncadd [#allocation5], %s246
          %s249 = sshll.u32 %s5, 4
          %s250 = int_to_ptr.vmem [resolvable:$true] %s249
          %252 = dma.vmem_to_smem %s250, 16, [#allocation11], [#allocation5]
        $region24: #{tpu_custom_call.1} parent=11 // pred_fallthru
          _
        // Predicated region
        $region25: #{tpu_custom_call.1} parent=11 // pred_check
          %p253 = pneg %p187
        $region26: #{tpu_custom_call.1} parent=11 // pred_check_branch
          %255 = sbr.rel (%p253) target = $region28
        $region27: #{tpu_custom_call.1} parent=11 // pred_region
          %s257 = ssub.s32 16, 16
          %258 = vsyncadd [#allocation13], %s257
          %s260 = sshll.u32 %s6, 4
          %s261 = int_to_ptr.vmem [resolvable:$true] %s260
          %263 = dma.vmem_to_smem %s261, 16, [#allocation12], [#allocation13]
        $region28: #{tpu_custom_call.1} parent=11 // pred_fallthru
          _
      $region12: #{tpu_custom_call.1} parent=5 // pred_fallthru
        _
      %p264 = scmp.lt.s32.totalorder %s25, 2
      // Predicated region
      $region29: #{tpu_custom_call.1} parent=5 // pred_check
        %p265 = pneg %p264
      $region30: #{tpu_custom_call.1} parent=5 // pred_check_branch
        %267 = sbr.rel (%p265) target = $region32
      $region31: #{tpu_custom_call.1} parent=5 // pred_region
        // Predicated region
        $region33: #{tpu_custom_call.1} parent=31 // pred_check
          %p268 = pneg %p87
        $region34: #{tpu_custom_call.1} parent=31 // pred_check_branch
          %270 = sbr.rel (%p268) target = $region36
        $region35: #{tpu_custom_call.1} parent=31 // pred_region
          %s271 = sand.u32 %s25, 1
          %s272 = scalar_lea.sflag [#allocation7], %s271
          %s273 = sand.u32 %s77, 1
          %s274 = smul.addr %s273, 256
          %s275 = scalar_lea.vmem [#allocation6], %s274
          %s276 = smul.u32 4, %s25
          %s278 = ssub.s32 4096, 4096
          %279 = vsyncadd %s272, %s278
          %s280 = smul.addr %s276, 128
          %s281 = scalar_lea.hbm %s2, %s280
          %s282 = sshll.u32 %s275, 4
          %s283 = int_to_ptr.vmem [resolvable:$true] %s282
          %288 = dma.hbm_to_vmem [thread:$0]  %s281, 4096, %s283, %s272, 1024, 512, 32
        $region36: #{tpu_custom_call.1} parent=31 // pred_fallthru
          _
        // Predicated region
        $region37: #{tpu_custom_call.1} parent=31 // pred_check
          %p289 = pneg %p113
        $region38: #{tpu_custom_call.1} parent=31 // pred_check_branch
          %291 = sbr.rel (%p289) target = $region40
        $region39: #{tpu_custom_call.1} parent=31 // pred_region
          %s292 = sand.u32 %s25, 1
          %s293 = scalar_lea.sflag [#allocation7], %s292
          %s294 = sand.u32 %s103, 1
          %s295 = smul.addr %s294, 256
          %s296 = scalar_lea.vmem [#allocation8], %s295
          %s297 = smul.u32 4, %s25
          %s299 = ssub.s32 4096, 4096
          %300 = vsyncadd %s293, %s299
          %s301 = smul.addr %s297, 128
          %s302 = scalar_lea.hbm %s3, %s301
          %s303 = sshll.u32 %s296, 4
          %s304 = int_to_ptr.vmem [resolvable:$true] %s303
          %309 = dma.hbm_to_vmem [thread:$0]  %s302, 4096, %s304, %s293, 1024, 512, 32
        $region40: #{tpu_custom_call.1} parent=31 // pred_fallthru
          _
        // Predicated region
        $region41: #{tpu_custom_call.1} parent=31 // pred_check
          %p310 = pneg %p139
        $region42: #{tpu_custom_call.1} parent=31 // pred_check_branch
          %312 = sbr.rel (%p310) target = $region44
        $region43: #{tpu_custom_call.1} parent=31 // pred_region
          %s313 = sand.u32 %s129, 1
          %s314 = scalar_lea.sflag [#allocation10], %s313
          %s315 = sand.u32 %s129, 1
          %s316 = smul.addr %s315, 16
          %s317 = scalar_lea.vmem [#allocation9], %s316
          %s318 = smul.u32 4, %s25
          %s320 = ssub.s32 256, 256
          %321 = vsyncadd %s314, %s320
          %s322 = smul.addr %s318, 32
          %s323 = scalar_lea.hbm %s4, %s322
          %s324 = sshll.u32 %s317, 4
          %s325 = int_to_ptr.vmem [resolvable:$true] %s324
          %330 = dma.hbm_to_vmem [thread:$0]  %s323, 256, %s325, %s314, 256, 128, 8
        $region44: #{tpu_custom_call.1} parent=31 // pred_fallthru
          _
      $region32: #{tpu_custom_call.1} parent=5 // pred_fallthru
        _
      %p331 = scmp.le.s32.totalorder 1, %s25
      %p332 = scmp.lt.s32.totalorder %s25, 3
      %p333 = pnand %p331, %p332
      %p334 = pneg %p333
      // Predicated region
      $region45: #{tpu_custom_call.1} parent=5 // pred_check
        _
      $region46: #{tpu_custom_call.1} parent=5 // pred_check_branch
        %336 = sbr.rel (%p333) target = $region48
      $region47: #{tpu_custom_call.1} parent=5 // pred_region
        %s337 = ssub.s32 %s25, 1
        // Predicated region
        $region49: #{tpu_custom_call.1} parent=47 // pred_check
          %p338 = pneg %p46
        $region50: #{tpu_custom_call.1} parent=47 // pred_check_branch
          %340 = sbr.rel (%p338) target = $region52
        $region51: #{tpu_custom_call.1} parent=47 // pred_region
          %341 = dma.done [#allocation3], 32
        $region52: #{tpu_custom_call.1} parent=47 // pred_fallthru
          _
        %s342 = sand.u32 %s30, 1
        %s343 = scalar_lea.sflag [#allocation7], %s342
        %s344 = sand.u32 %s80, 1
        %s345 = smul.addr %s344, 256
        %s346 = scalar_lea.vmem [#allocation6], %s345
        // Predicated region
        $region53: #{tpu_custom_call.1} parent=47 // pred_check
          %p347 = pneg %p93
        $region54: #{tpu_custom_call.1} parent=47 // pred_check_branch
          %349 = sbr.rel (%p347) target = $region56
        $region55: #{tpu_custom_call.1} parent=47 // pred_region
          %350 = dma.done %s343, 4096
        $region56: #{tpu_custom_call.1} parent=47 // pred_fallthru
          _
        %s351 = sand.u32 %s30, 1
        %s352 = scalar_lea.sflag [#allocation7], %s351
        %s353 = sand.u32 %s106, 1
        %s354 = smul.addr %s353, 256
        %s355 = scalar_lea.vmem [#allocation8], %s354
        // Predicated region
        $region57: #{tpu_custom_call.1} parent=47 // pred_check
          %p356 = pneg %p119
        $region58: #{tpu_custom_call.1} parent=47 // pred_check_branch
          %358 = sbr.rel (%p356) target = $region60
        $region59: #{tpu_custom_call.1} parent=47 // pred_region
          %359 = dma.done %s352, 4096
        $region60: #{tpu_custom_call.1} parent=47 // pred_fallthru
          _
        %s360 = sand.u32 %s132, 1
        %s361 = scalar_lea.sflag [#allocation10], %s360
        %s362 = sand.u32 %s132, 1
        %s363 = smul.addr %s362, 16
        %s364 = scalar_lea.vmem [#allocation9], %s363
        // Predicated region
        $region61: #{tpu_custom_call.1} parent=47 // pred_check
          %p365 = pneg %p145
        $region62: #{tpu_custom_call.1} parent=47 // pred_check_branch
          %367 = sbr.rel (%p365) target = $region64
        $region63: #{tpu_custom_call.1} parent=47 // pred_region
          %368 = dma.done %s361, 256
        $region64: #{tpu_custom_call.1} parent=47 // pred_fallthru
          _
        // Predicated region
        $region65: #{tpu_custom_call.1} parent=47 // pred_check
          %p369 = pneg %p166
        $region66: #{tpu_custom_call.1} parent=47 // pred_check_branch
          %371 = sbr.rel (%p369) target = $region68
        $region67: #{tpu_custom_call.1} parent=47 // pred_region
          %372 = dma.done [#allocation5], 16
        $region68: #{tpu_custom_call.1} parent=47 // pred_fallthru
          _
        // Predicated region
        $region69: #{tpu_custom_call.1} parent=47 // pred_check
          %p373 = pneg %p187
        $region70: #{tpu_custom_call.1} parent=47 // pred_check_branch
          %375 = sbr.rel (%p373) target = $region72
        $region71: #{tpu_custom_call.1} parent=47 // pred_region
          %376 = dma.done [#allocation13], 16
        $region72: #{tpu_custom_call.1} parent=47 // pred_fallthru
          _
        %377 = sfence
        %p378 = pneg %p46
        %p379 = pneg %p43
        %p380 = pneg %p67
        %p381 = pneg %p64
        %s382 = sand.u32 %s30, 1
        %s383 = scalar_lea.sflag [#allocation7], %s382
        %s384 = sand.u32 %s80, 1
        %s385 = smul.addr %s384, 256
        %s386 = scalar_lea.vmem [#allocation6], %s385
        %p387 = pneg %p93
        %p388 = pneg %p90
        %s389 = sand.u32 %s30, 1
        %s390 = scalar_lea.sflag [#allocation7], %s389
        %s391 = sand.u32 %s106, 1
        %s392 = smul.addr %s391, 256
        %s393 = scalar_lea.vmem [#allocation8], %s392
        %p394 = pneg %p119
        %p395 = pneg %p116
        %s396 = sand.u32 %s132, 1
        %s397 = scalar_lea.sflag [#allocation10], %s396
        %s398 = sand.u32 %s132, 1
        %s399 = smul.addr %s398, 16
        %s400 = scalar_lea.vmem [#allocation9], %s399
        %p401 = pneg %p145
        %p402 = pneg %p142
        %p403 = pneg %p166
        %p404 = pneg %p163
        %p405 = pneg %p187
        %p406 = pneg %p184
        %p407 = pneg %p213
        %p408 = pneg %p210
        %s409 = sand.u32 %s200, 1
        %s410 = scalar_lea.sflag [#allocation4], %s409
        %s411 = sand.u32 %s200, 1
        %s412 = smul.addr %s411, 8
        %s413 = scalar_lea.vmem [#allocation14], %s412
        %s414 = smul.u32 4, %s30
        %s415 = smul.u32 4, %s30
        %s416 = smul.u32 4, %s30
        %s417 = smul.u32 4, %s30
        %v418 = vld [vmem:[#allocation2] sm:$0x3]
        %v419 = vld [vmem:[%s346] sm:$0xff]
        %v420 = vld [vmem:[%s346 + $0x8] sm:$0xff]
        %v421 = vld [vmem:[%s346 + $0x10] sm:$0xff]
        %v422 = vld [vmem:[%s346 + $0x18] sm:$0xff]
        %v423 = vld [vmem:[%s346 + $0x20] sm:$0xff]
        %v424 = vld [vmem:[%s346 + $0x28] sm:$0xff]
        %v425 = vld [vmem:[%s346 + $0x30] sm:$0xff]
        %v426 = vld [vmem:[%s346 + $0x38] sm:$0xff]
        %v427 = vld [vmem:[%s346 + $0x40] sm:$0xff]
        %v428 = vld [vmem:[%s346 + $0x48] sm:$0xff]
        %v429 = vld [vmem:[%s346 + $0x50] sm:$0xff]
        %v430 = vld [vmem:[%s346 + $0x58] sm:$0xff]
        %v431 = vld [vmem:[%s346 + $0x60] sm:$0xff]
        %v432 = vld [vmem:[%s346 + $0x68] sm:$0xff]
        %v433 = vld [vmem:[%s346 + $0x70] sm:$0xff]
        %v434 = vld [vmem:[%s346 + $0x78] sm:$0xff]
        %v435 = vld [vmem:[%s346 + $0x80] sm:$0xff]
        %v436 = vld [vmem:[%s346 + $0x88] sm:$0xff]
        %v437 = vld [vmem:[%s346 + $0x90] sm:$0xff]
        %v438 = vld [vmem:[%s346 + $0x98] sm:$0xff]
        %v439 = vld [vmem:[%s346 + $0xa0] sm:$0xff]
        %v440 = vld [vmem:[%s346 + $0xa8] sm:$0xff]
        %v441 = vld [vmem:[%s346 + $0xb0] sm:$0xff]
        %v442 = vld [vmem:[%s346 + $0xb8] sm:$0xff]
        %v443 = vld [vmem:[%s346 + $0xc0] sm:$0xff]
        %v444 = vld [vmem:[%s346 + $0xc8] sm:$0xff]
        %v445 = vld [vmem:[%s346 + $0xd0] sm:$0xff]
        %v446 = vld [vmem:[%s346 + $0xd8] sm:$0xff]
        %v447 = vld [vmem:[%s346 + $0xe0] sm:$0xff]
        %v448 = vld [vmem:[%s346 + $0xe8] sm:$0xff]
        %v449 = vld [vmem:[%s346 + $0xf0] sm:$0xff]
        %v450 = vld [vmem:[%s346 + $0xf8] sm:$0xff]
        %vm451 = vcmask 523264
        %v453 = vsel %vm451, %v418, 0
        %455 = vmatprep.subr.mxu0 %v420
        %456 = vmatpush1.msra.mxu0 %v419
        %457 = vmatprep.subr.mxu0 %v424
        %458 = vmatpush1.msra.mxu0 %v423
        %459 = vmatprep.subr.mxu0 %v428
        %460 = vmatpush1.msra.mxu0 %v427
        %461 = vmatprep.subr.mxu0 %v432
        %462 = vmatpush1.msra.mxu0 %v431
        %463 = vmatprep.subr.mxu0 %v436
        %464 = vmatpush1.msra.mxu0 %v435
        %465 = vmatprep.subr.mxu0 %v440
        %466 = vmatpush1.msra.mxu0 %v439
        %467 = vmatprep.subr.mxu0 %v444
        %468 = vmatpush1.msra.mxu0 %v443
        %469 = vmatprep.subr.mxu0 %v448
        %470 = vmatpush1.msra.mxu0 %v447
        %471 = vmatprep.subr.mxu0 0.0
        %472 = vmatpush1.msra.mxu0 0.0
        %473 = vmatprep.subr.mxu0 0.0
        %474 = vmatpush1.msra.mxu0 0.0
        %475 = vmatprep.subr.mxu0 0.0
        %476 = vmatpush1.msra.mxu0 0.0
        %477 = vmatprep.subr.mxu0 0.0
        %478 = vmatpush1.msra.mxu0 0.0
        %479 = vmatprep.subr.mxu0 0.0
        %480 = vmatpush1.msra.mxu0 0.0
        %481 = vmatprep.subr.mxu0 0.0
        %482 = vmatpush1.msra.mxu0 0.0
        %483 = vmatprep.subr.mxu0 0.0
        %484 = vmatpush1.msra.mxu0 0.0
        %485 = vmatprep.subr.mxu0 0.0
        %486 = vmatpush1.msra.mxu0 0.0
        %487 = vmatprep.subr.mxu0 0.0
        %488 = vmatpush1.msra.mxu0 0.0
        %489 = vmatprep.subr.mxu0 0.0
        %490 = vmatpush1.msra.mxu0 0.0
        %491 = vmatprep.subr.mxu0 0.0
        %492 = vmatpush1.msra.mxu0 0.0
        %493 = vmatprep.subr.mxu0 0.0
        %494 = vmatpush1.msra.mxu0 0.0
        %495 = vmatprep.subr.mxu0 0.0
        %496 = vmatpush1.msra.mxu0 0.0
        %497 = vmatprep.subr.mxu0 0.0
        %498 = vmatpush1.msra.mxu0 0.0
        %499 = vmatprep.subr.mxu0 0.0
        %500 = vmatpush1.msra.mxu0 0.0
        %501 = vmatprep.subr.mxu0 0.0
        %502 = vmatpush1.msra.mxu0 0.0
        %503 = vmatprep.subr.mxu0 0.0
        %504 = vmatpush1.msra.mxu0 0.0
        %505 = vmatprep.subr.mxu0 0.0
        %506 = vmatpush1.msra.mxu0 0.0
        %507 = vmatprep.subr.mxu0 0.0
        %508 = vmatpush1.msra.mxu0 0.0
        %509 = vmatprep.subr.mxu0 0.0
        %510 = vmatpush1.msra.mxu0 0.0
        %511 = vmatprep.subr.mxu0 0.0
        %512 = vmatpush1.msra.mxu0 0.0
        %513 = vmatprep.subr.mxu0 0.0
        %514 = vmatpush1.msra.mxu0 0.0
        %515 = vmatprep.subr.mxu0 0.0
        %516 = vmatpush1.msra.mxu0 0.0
        %517 = vmatprep.subr.mxu0 0.0
        %518 = vmatpush1.msra.mxu0 0.0
        %519 = vmatprep.mubr.f32.mxu0 0.0
        %520 = vmatmul.mubr.f32.gmra.mrb[0].mxu0 %v453
        %v521 = vpop.f32.mrb[0].mxu0
        %v522 = vadd.f32 0.0, %v521
        %v523 = vpop.f32.mrb[0].mxu0
        %v524 = vadd.f32 0.0, %v523
        %525 = vdwg.mxu0
        %526 = vmatprep.subr.mxu0 %v422
        %527 = vmatpush1.msra.mxu0 %v421
        %528 = vmatprep.subr.mxu0 %v426
        %529 = vmatpush1.msra.mxu0 %v425
        %530 = vmatprep.subr.mxu0 %v430
        %531 = vmatpush1.msra.mxu0 %v429
        %532 = vmatprep.subr.mxu0 %v434
        %533 = vmatpush1.msra.mxu0 %v433
        %534 = vmatprep.subr.mxu0 %v438
        %535 = vmatpush1.msra.mxu0 %v437
        %536 = vmatprep.subr.mxu0 %v442
        %537 = vmatpush1.msra.mxu0 %v441
        %538 = vmatprep.subr.mxu0 %v446
        %539 = vmatpush1.msra.mxu0 %v445
        %540 = vmatprep.subr.mxu0 %v450
        %541 = vmatpush1.msra.mxu0 %v449
        %542 = vmatprep.subr.mxu0 0.0
        %543 = vmatpush1.msra.mxu0 0.0
        %544 = vmatprep.subr.mxu0 0.0
        %545 = vmatpush1.msra.mxu0 0.0
        %546 = vmatprep.subr.mxu0 0.0
        %547 = vmatpush1.msra.mxu0 0.0
        %548 = vmatprep.subr.mxu0 0.0
        %549 = vmatpush1.msra.mxu0 0.0
        %550 = vmatprep.subr.mxu0 0.0
        %551 = vmatpush1.msra.mxu0 0.0
        %552 = vmatprep.subr.mxu0 0.0
        %553 = vmatpush1.msra.mxu0 0.0
        %554 = vmatprep.subr.mxu0 0.0
        %555 = vmatpush1.msra.mxu0 0.0
        %556 = vmatprep.subr.mxu0 0.0
        %557 = vmatpush1.msra.mxu0 0.0
        %558 = vmatprep.subr.mxu0 0.0
        %559 = vmatpush1.msra.mxu0 0.0
        %560 = vmatprep.subr.mxu0 0.0
        %561 = vmatpush1.msra.mxu0 0.0
        %562 = vmatprep.subr.mxu0 0.0
        %563 = vmatpush1.msra.mxu0 0.0
        %564 = vmatprep.subr.mxu0 0.0
        %565 = vmatpush1.msra.mxu0 0.0
        %566 = vmatprep.subr.mxu0 0.0
        %567 = vmatpush1.msra.mxu0 0.0
        %568 = vmatprep.subr.mxu0 0.0
        %569 = vmatpush1.msra.mxu0 0.0
        %570 = vmatprep.subr.mxu0 0.0
        %571 = vmatpush1.msra.mxu0 0.0
        %572 = vmatprep.subr.mxu0 0.0
        %573 = vmatpush1.msra.mxu0 0.0
        %574 = vmatprep.subr.mxu0 0.0
        %575 = vmatpush1.msra.mxu0 0.0
        %576 = vmatprep.subr.mxu0 0.0
        %577 = vmatpush1.msra.mxu0 0.0
        %578 = vmatprep.subr.mxu0 0.0
        %579 = vmatpush1.msra.mxu0 0.0
        %580 = vmatprep.subr.mxu0 0.0
        %581 = vmatpush1.msra.mxu0 0.0
        %582 = vmatprep.subr.mxu0 0.0
        %583 = vmatpush1.msra.mxu0 0.0
        %584 = vmatprep.subr.mxu0 0.0
        %585 = vmatpush1.msra.mxu0 0.0
        %586 = vmatprep.subr.mxu0 0.0
        %587 = vmatpush1.msra.mxu0 0.0
        %588 = vmatprep.subr.mxu0 0.0
        %589 = vmatpush1.msra.mxu0 0.0
        %590 = vmatprep.mubr.f32.mxu0 0.0
        %591 = vmatmul.mubr.f32.gmra.mrb[0].mxu0 %v453
        %v592 = vpop.f32.mrb[0].mxu0
        %v593 = vadd.f32 0.0, %v592
        %v594 = vpop.f32.mrb[0].mxu0
        %v595 = vadd.f32 0.0, %v594
        %596 = vdwg.mxu0
        %v597 = vld [vmem:[%s1] sm:$0x3]
        %v598 = vld [vmem:[%s355] sm:$0xff]
        %v599 = vld [vmem:[%s355 + $0x8] sm:$0xff]
        %v600 = vld [vmem:[%s355 + $0x10] sm:$0xff]
        %v601 = vld [vmem:[%s355 + $0x18] sm:$0xff]
        %v602 = vld [vmem:[%s355 + $0x20] sm:$0xff]
        %v603 = vld [vmem:[%s355 + $0x28] sm:$0xff]
        %v604 = vld [vmem:[%s355 + $0x30] sm:$0xff]
        %v605 = vld [vmem:[%s355 + $0x38] sm:$0xff]
        %v606 = vld [vmem:[%s355 + $0x40] sm:$0xff]
        %v607 = vld [vmem:[%s355 + $0x48] sm:$0xff]
        %v608 = vld [vmem:[%s355 + $0x50] sm:$0xff]
        %v609 = vld [vmem:[%s355 + $0x58] sm:$0xff]
        %v610 = vld [vmem:[%s355 + $0x60] sm:$0xff]
        %v611 = vld [vmem:[%s355 + $0x68] sm:$0xff]
        %v612 = vld [vmem:[%s355 + $0x70] sm:$0xff]
        %v613 = vld [vmem:[%s355 + $0x78] sm:$0xff]
        %v614 = vld [vmem:[%s355 + $0x80] sm:$0xff]
        %v615 = vld [vmem:[%s355 + $0x88] sm:$0xff]
        %v616 = vld [vmem:[%s355 + $0x90] sm:$0xff]
        %v617 = vld [vmem:[%s355 + $0x98] sm:$0xff]
        %v618 = vld [vmem:[%s355 + $0xa0] sm:$0xff]
        %v619 = vld [vmem:[%s355 + $0xa8] sm:$0xff]
        %v620 = vld [vmem:[%s355 + $0xb0] sm:$0xff]
        %v621 = vld [vmem:[%s355 + $0xb8] sm:$0xff]
        %v622 = vld [vmem:[%s355 + $0xc0] sm:$0xff]
        %v623 = vld [vmem:[%s355 + $0xc8] sm:$0xff]
        %v624 = vld [vmem:[%s355 + $0xd0] sm:$0xff]
        %v625 = vld [vmem:[%s355 + $0xd8] sm:$0xff]
        %v626 = vld [vmem:[%s355 + $0xe0] sm:$0xff]
        %v627 = vld [vmem:[%s355 + $0xe8] sm:$0xff]
        %v628 = vld [vmem:[%s355 + $0xf0] sm:$0xff]
        %v629 = vld [vmem:[%s355 + $0xf8] sm:$0xff]
        %v631 = vsel %vm451, %v597, 0
        %633 = vmatprep.subr.mxu0 %v599
        %634 = vmatpush1.msra.mxu0 %v598
        %635 = vmatprep.subr.mxu0 %v603
        %636 = vmatpush1.msra.mxu0 %v602
        %637 = vmatprep.subr.mxu0 %v607
        %638 = vmatpush1.msra.mxu0 %v606
        %639 = vmatprep.subr.mxu0 %v611
        %640 = vmatpush1.msra.mxu0 %v610
        %641 = vmatprep.subr.mxu0 %v615
        %642 = vmatpush1.msra.mxu0 %v614
        %643 = vmatprep.subr.mxu0 %v619
        %644 = vmatpush1.msra.mxu0 %v618
        %645 = vmatprep.subr.mxu0 %v623
        %646 = vmatpush1.msra.mxu0 %v622
        %647 = vmatprep.subr.mxu0 %v627
        %648 = vmatpush1.msra.mxu0 %v626
        %649 = vmatprep.subr.mxu0 0.0
        %650 = vmatpush1.msra.mxu0 0.0
        %651 = vmatprep.subr.mxu0 0.0
        %652 = vmatpush1.msra.mxu0 0.0
        %653 = vmatprep.subr.mxu0 0.0
        %654 = vmatpush1.msra.mxu0 0.0
        %655 = vmatprep.subr.mxu0 0.0
        %656 = vmatpush1.msra.mxu0 0.0
        %657 = vmatprep.subr.mxu0 0.0
        %658 = vmatpush1.msra.mxu0 0.0
        %659 = vmatprep.subr.mxu0 0.0
        %660 = vmatpush1.msra.mxu0 0.0
        %661 = vmatprep.subr.mxu0 0.0
        %662 = vmatpush1.msra.mxu0 0.0
        %663 = vmatprep.subr.mxu0 0.0
        %664 = vmatpush1.msra.mxu0 0.0
        %665 = vmatprep.subr.mxu0 0.0
        %666 = vmatpush1.msra.mxu0 0.0
        %667 = vmatprep.subr.mxu0 0.0
        %668 = vmatpush1.msra.mxu0 0.0
        %669 = vmatprep.subr.mxu0 0.0
        %670 = vmatpush1.msra.mxu0 0.0
        %671 = vmatprep.subr.mxu0 0.0
        %672 = vmatpush1.msra.mxu0 0.0
        %673 = vmatprep.subr.mxu0 0.0
        %674 = vmatpush1.msra.mxu0 0.0
        %675 = vmatprep.subr.mxu0 0.0
        %676 = vmatpush1.msra.mxu0 0.0
        %677 = vmatprep.subr.mxu0 0.0
        %678 = vmatpush1.msra.mxu0 0.0
        %679 = vmatprep.subr.mxu0 0.0
        %680 = vmatpush1.msra.mxu0 0.0
        %681 = vmatprep.subr.mxu0 0.0
        %682 = vmatpush1.msra.mxu0 0.0
        %683 = vmatprep.subr.mxu0 0.0
        %684 = vmatpush1.msra.mxu0 0.0
        %685 = vmatprep.subr.mxu0 0.0
        %686 = vmatpush1.msra.mxu0 0.0
        %687 = vmatprep.subr.mxu0 0.0
        %688 = vmatpush1.msra.mxu0 0.0
        %689 = vmatprep.subr.mxu0 0.0
        %690 = vmatpush1.msra.mxu0 0.0
        %691 = vmatprep.subr.mxu0 0.0
        %692 = vmatpush1.msra.mxu0 0.0
        %693 = vmatprep.subr.mxu0 0.0
        %694 = vmatpush1.msra.mxu0 0.0
        %695 = vmatprep.subr.mxu0 0.0
        %696 = vmatpush1.msra.mxu0 0.0
        %697 = vmatprep.mubr.f32.mxu0 0.0
        %698 = vmatmul.mubr.f32.gmra.mrb[0].mxu0 %v631
        %v699 = vpop.f32.mrb[0].mxu0
        %v700 = vadd.f32 0.0, %v699
        %v701 = vpop.f32.mrb[0].mxu0
        %v702 = vadd.f32 0.0, %v701
        %703 = vdwg.mxu0
        %704 = vmatprep.subr.mxu0 %v601
        %705 = vmatpush1.msra.mxu0 %v600
        %706 = vmatprep.subr.mxu0 %v605
        %707 = vmatpush1.msra.mxu0 %v604
        %708 = vmatprep.subr.mxu0 %v609
        %709 = vmatpush1.msra.mxu0 %v608
        %710 = vmatprep.subr.mxu0 %v613
        %711 = vmatpush1.msra.mxu0 %v612
        %712 = vmatprep.subr.mxu0 %v617
        %713 = vmatpush1.msra.mxu0 %v616
        %714 = vmatprep.subr.mxu0 %v621
        %715 = vmatpush1.msra.mxu0 %v620
        %716 = vmatprep.subr.mxu0 %v625
        %717 = vmatpush1.msra.mxu0 %v624
        %718 = vmatprep.subr.mxu0 %v629
        %719 = vmatpush1.msra.mxu0 %v628
        %720 = vmatprep.subr.mxu0 0.0
        %721 = vmatpush1.msra.mxu0 0.0
        %722 = vmatprep.subr.mxu0 0.0
        %723 = vmatpush1.msra.mxu0 0.0
        %724 = vmatprep.subr.mxu0 0.0
        %725 = vmatpush1.msra.mxu0 0.0
        %726 = vmatprep.subr.mxu0 0.0
        %727 = vmatpush1.msra.mxu0 0.0
        %728 = vmatprep.subr.mxu0 0.0
        %729 = vmatpush1.msra.mxu0 0.0
        %730 = vmatprep.subr.mxu0 0.0
        %731 = vmatpush1.msra.mxu0 0.0
        %732 = vmatprep.subr.mxu0 0.0
        %733 = vmatpush1.msra.mxu0 0.0
        %734 = vmatprep.subr.mxu0 0.0
        %735 = vmatpush1.msra.mxu0 0.0
        %736 = vmatprep.subr.mxu0 0.0
        %737 = vmatpush1.msra.mxu0 0.0
        %738 = vmatprep.subr.mxu0 0.0
        %739 = vmatpush1.msra.mxu0 0.0
        %740 = vmatprep.subr.mxu0 0.0
        %741 = vmatpush1.msra.mxu0 0.0
        %742 = vmatprep.subr.mxu0 0.0
        %743 = vmatpush1.msra.mxu0 0.0
        %744 = vmatprep.subr.mxu0 0.0
        %745 = vmatpush1.msra.mxu0 0.0
        %746 = vmatprep.subr.mxu0 0.0
        %747 = vmatpush1.msra.mxu0 0.0
        %748 = vmatprep.subr.mxu0 0.0
        %749 = vmatpush1.msra.mxu0 0.0
        %750 = vmatprep.subr.mxu0 0.0
        %751 = vmatpush1.msra.mxu0 0.0
        %752 = vmatprep.subr.mxu0 0.0
        %753 = vmatpush1.msra.mxu0 0.0
        %754 = vmatprep.subr.mxu0 0.0
        %755 = vmatpush1.msra.mxu0 0.0
        %756 = vmatprep.subr.mxu0 0.0
        %757 = vmatpush1.msra.mxu0 0.0
        %758 = vmatprep.subr.mxu0 0.0
        %759 = vmatpush1.msra.mxu0 0.0
        %760 = vmatprep.subr.mxu0 0.0
        %761 = vmatpush1.msra.mxu0 0.0
        %762 = vmatprep.subr.mxu0 0.0
        %763 = vmatpush1.msra.mxu0 0.0
        %764 = vmatprep.subr.mxu0 0.0
        %765 = vmatpush1.msra.mxu0 0.0
        %766 = vmatprep.subr.mxu0 0.0
        %767 = vmatpush1.msra.mxu0 0.0
        %768 = vmatprep.mubr.f32.mxu0 0.0
        %769 = vmatmul.mubr.f32.gmra.mrb[0].mxu0 %v631
        %v770 = vpop.f32.mrb[0].mxu0
        %v771 = vadd.f32 0.0, %v770
        %v772 = vpop.f32.mrb[0].mxu0
        %v773 = vadd.f32 0.0, %v772
        %774 = vdwg.mxu0
        %s775 = sld [smem:[#allocation11]]
        %v776 = vstv %s775
        %v777 = vadd.f32 %v522, %v776
        %v778 = vadd.f32 %v524, %v776
        %v779 = vadd.f32 %v593, %v776
        %v780 = vadd.f32 %v595, %v776
        %v781 = vfloor.f32 %v777
        %v782 = vfloor.f32 %v778
        %v783 = vfloor.f32 %v779
        %v784 = vfloor.f32 %v780
        %v785 = vsub.f32 %v777, %v781
        %v786 = vsub.f32 %v778, %v782
        %v787 = vsub.f32 %v779, %v783
        %v788 = vsub.f32 %v780, %v784
        %v789 = vmul.f32 %v785, 6.2831855
        %v790 = vmul.f32 %v786, 6.2831855
        %v791 = vmul.f32 %v787, 6.2831855
        %v792 = vmul.f32 %v788, 6.2831855
        %v793 = vld [vmem:[%s364] sm:$0xff]
        %v794 = vand.u32 2147483647, %v789
        %vm795 = vcmp.le.f32.partialorder %v794, 0.7853982
        %vm796 = vcmp.lt.s32.totalorder %v789, 0
        %v797 = vand.u32 %v789, 2139095040
        %v798 = vshrl.u32 %v797, 23
        %v799 = vsub.s32 %v798, 127
        %v800 = vand.u32 2147483647, %v789
        %v801 = vand.u32 %v800, 8388607
        %v802 = vor.u32 %v801, 8388608
        %v803 = vsub.s32 0, %v802
        %v804 = vadd.s32 %v799, 1
        %vm805 = vcmp.gt.s32.totalorder %v804, 0
        %v806 = vsel %vm805, %v804, 0
        %v807 = vshrl.u32 %v806, 5
        %v808 = vand.u32 %v806, 31
        %v809 = vsub.s32 32, %v808
        %v810 = vshrl.u32 683565275, %v809
        %v811 = vshll.u32 683565275, %v808
        %v812 = vshrl.u32 2475754826, %v809
        %v813 = vor.u32 %v811, %v812
        %v814 = vshll.u32 2475754826, %v808
        %v815 = vshrl.u32 2131351028, %v809
        %v816 = vor.u32 %v814, %v815
        %v817 = vshll.u32 2131351028, %v808
        %v818 = vshrl.u32 2102212464, %v809
        %v819 = vor.u32 %v817, %v818
        %v820 = vshll.u32 2102212464, %v808
        %v821 = vshrl.u32 920167782, %v809
        %v822 = vor.u32 %v820, %v821
        %v823 = vshll.u32 920167782, %v808
        %v824 = vshrl.u32 1326507024, %v809
        %v825 = vor.u32 %v823, %v824
        %vm826 = vcmp.lt.s32.totalorder %v807, 1
        %vm827 = vcmp.lt.s32.totalorder %v807, 2
        %vm828 = vcmp.lt.s32.totalorder %v807, 3
        %vm829 = vcmp.lt.s32.totalorder %v807, 4
        %v830 = vsel %vm826, %v810, %v813
        %v831 = vsel %vm829, %v819, 2102212464
        %v832 = vsel %vm828, %v816, %v831
        %v833 = vsel %vm827, %v830, %v832
        %v834 = vsel %vm826, %v813, %v816
        %v835 = vsel %vm829, %v822, 920167782
        %v836 = vsel %vm828, %v819, %v835
        %v837 = vsel %vm827, %v834, %v836
        %v838 = vsel %vm826, %v816, %v819
        %v839 = vsel %vm829, %v825, 1326507024
        %v840 = vsel %vm828, %v822, %v839
        %v841 = vsel %vm827, %v838, %v840
        %v842 = vshll.u32 %v802, 8
        %v843 = vmul.u32.u64.compose %v842, %v841
        %v844 = vextract.low.u32 %v843
        %v845 = vextract.high.u32 %v843
        %v846 = vmul.u32.u64.compose %v842, %v837
        %v847 = vextract.low.u32 %v846
        %v848 = vextract.high.u32 %v846
        %v849 = vmul.u32 %v842, %v833
        %v850 = vadd.s32 %v845, %v847
        %vm851 = vc.u32 %v845, %v847
        %v852 = vadd.s32 %v848, 1
        %v853 = vsel %vm851, %v852, %v848
        %v854 = vadd.s32 %v849, %v853
        %v855 = vadd.s32 %v854, 536870912
        %v856 = vshrl.u32 %v855, 30
        %v857 = vshll.u32 %v856, 30
        %v858 = vsub.s32 %v854, %v857
        %vm859 = vcmp.lt.s32.totalorder %v858, 0
        %v860 = vsub.s32 0, %v858
        %v861 = vsel %vm859, %v860, %v858
        %v862 = vclz %v861
        %v863 = vsub.s32 %v862, 2
        %vm864 = vcmp.gt.s32.totalorder 0, %v863
        %v865 = vsel %vm864, 0, %v863
        %v866 = vsub.s32 32, %v865
        %v867 = vshll.u32 %v858, %v865
        %v868 = vshrl.u32 %v850, %v866
        %v869 = vor.u32 %v867, %v868
        %v870 = vsub.s32 4294967266, %v865
        %v871 = vadd.s32 %v870, 127
        %v872 = vshll.u32 %v871, 23
        %v873 = vor.u32 4788187, %v872
        %v874 = vand.u32 2147483647, %v873
        %v876 = vcvt.s32.f32 %v869
        %v877 = vmul.f32 %v876, %v874
        %v878 = vxor.u32 %v877, 2147483648
        %v879 = vsel %vm796, %v878, %v877
        %v880 = vsub.s32 4, %v856
        %v881 = vsel %vm796, %v880, %v856
        %v882 = vsel %vm795, %v789, %v879
        %v883 = vsel %vm795, 0, %v881
        %v884 = vcosq.f32.pop %v882
        %v885 = vsinq.f32.pop %v882
        %vm886 = vweird.f32 %v789
        %v887 = vadd.s32 %v883, 3
        %v888 = vand.u32 %v887, 3
        %vm889 = vcmp.lt.s32.totalorder %v888, 2
        %vm890 = vcmp.eq.s32.totalorder %v888, 0
        %v891 = vxor.u32 %v885, 2147483648
        %v892 = vsel %vm890, %v884, %v891
        %vm893 = vcmp.eq.s32.totalorder %v888, 2
        %v894 = vxor.u32 %v884, 2147483648
        %v895 = vsel %vm893, %v894, %v885
        %v896 = vsel %vm889, %v892, %v895
        %v897 = vsel %vm886, nan, %v896
        %v898 = vand.u32 2147483647, %v790
        %vm899 = vcmp.le.f32.partialorder %v898, 0.7853982
        %vm900 = vcmp.lt.s32.totalorder %v790, 0
        %v901 = vand.u32 %v790, 2139095040
        %v902 = vshrl.u32 %v901, 23
        %v903 = vsub.s32 %v902, 127
        %v904 = vand.u32 2147483647, %v790
        %v905 = vand.u32 %v904, 8388607
        %v906 = vor.u32 %v905, 8388608
        %v907 = vsub.s32 0, %v906
        %v908 = vadd.s32 %v903, 1
        %vm909 = vcmp.gt.s32.totalorder %v908, 0
        %v910 = vsel %vm909, %v908, 0
        %v911 = vshrl.u32 %v910, 5
        %v912 = vand.u32 %v910, 31
        %v913 = vsub.s32 32, %v912
        %v914 = vshrl.u32 683565275, %v913
        %v915 = vshll.u32 683565275, %v912
        %v916 = vshrl.u32 2475754826, %v913
        %v917 = vor.u32 %v915, %v916
        %v918 = vshll.u32 2475754826, %v912
        %v919 = vshrl.u32 2131351028, %v913
        %v920 = vor.u32 %v918, %v919
        %v921 = vshll.u32 2131351028, %v912
        %v922 = vshrl.u32 2102212464, %v913
        %v923 = vor.u32 %v921, %v922
        %v924 = vshll.u32 2102212464, %v912
        %v925 = vshrl.u32 920167782, %v913
        %v926 = vor.u32 %v924, %v925
        %v927 = vshll.u32 920167782, %v912
        %v928 = vshrl.u32 1326507024, %v913
        %v929 = vor.u32 %v927, %v928
        %vm930 = vcmp.lt.s32.totalorder %v911, 1
        %vm931 = vcmp.lt.s32.totalorder %v911, 2
        %vm932 = vcmp.lt.s32.totalorder %v911, 3
        %vm933 = vcmp.lt.s32.totalorder %v911, 4
        %v934 = vsel %vm930, %v914, %v917
        %v935 = vsel %vm933, %v923, 2102212464
        %v936 = vsel %vm932, %v920, %v935
        %v937 = vsel %vm931, %v934, %v936
        %v938 = vsel %vm930, %v917, %v920
        %v939 = vsel %vm933, %v926, 920167782
        %v940 = vsel %vm932, %v923, %v939
        %v941 = vsel %vm931, %v938, %v940
        %v942 = vsel %vm930, %v920, %v923
        %v943 = vsel %vm933, %v929, 1326507024
        %v944 = vsel %vm932, %v926, %v943
        %v945 = vsel %vm931, %v942, %v944
        %v946 = vshll.u32 %v906, 8
        %v947 = vmul.u32.u64.compose %v946, %v945
        %v948 = vextract.low.u32 %v947
        %v949 = vextract.high.u32 %v947
        %v950 = vmul.u32.u64.compose %v946, %v941
        %v951 = vextract.low.u32 %v950
        %v952 = vextract.high.u32 %v950
        %v953 = vmul.u32 %v946, %v937
        %v954 = vadd.s32 %v949, %v951
        %vm955 = vc.u32 %v949, %v951
        %v956 = vadd.s32 %v952, 1
        %v957 = vsel %vm955, %v956, %v952
        %v958 = vadd.s32 %v953, %v957
        %v959 = vadd.s32 %v958, 536870912
        %v960 = vshrl.u32 %v959, 30
        %v961 = vshll.u32 %v960, 30
        %v962 = vsub.s32 %v958, %v961
        %vm963 = vcmp.lt.s32.totalorder %v962, 0
        %v964 = vsub.s32 0, %v962
        %v965 = vsel %vm963, %v964, %v962
        %v966 = vclz %v965
        %v967 = vsub.s32 %v966, 2
        %vm968 = vcmp.gt.s32.totalorder 0, %v967
        %v969 = vsel %vm968, 0, %v967
        %v970 = vsub.s32 32, %v969
        %v971 = vshll.u32 %v962, %v969
        %v972 = vshrl.u32 %v954, %v970
        %v973 = vor.u32 %v971, %v972
        %v974 = vsub.s32 4294967266, %v969
        %v975 = vadd.s32 %v974, 127
        %v976 = vshll.u32 %v975, 23
        %v977 = vor.u32 4788187, %v976
        %v978 = vand.u32 2147483647, %v977
        %v980 = vcvt.s32.f32 %v973
        %v981 = vmul.f32 %v980, %v978
        %v982 = vxor.u32 %v981, 2147483648
        %v983 = vsel %vm900, %v982, %v981
        %v984 = vsub.s32 4, %v960
        %v985 = vsel %vm900, %v984, %v960
        %v986 = vsel %vm899, %v790, %v983
        %v987 = vsel %vm899, 0, %v985
        %v988 = vcosq.f32.pop %v986
        %v989 = vsinq.f32.pop %v986
        %vm990 = vweird.f32 %v790
        %v991 = vadd.s32 %v987, 3
        %v992 = vand.u32 %v991, 3
        %vm993 = vcmp.lt.s32.totalorder %v992, 2
        %vm994 = vcmp.eq.s32.totalorder %v992, 0
        %v995 = vxor.u32 %v989, 2147483648
        %v996 = vsel %vm994, %v988, %v995
        %vm997 = vcmp.eq.s32.totalorder %v992, 2
        %v998 = vxor.u32 %v988, 2147483648
        %v999 = vsel %vm997, %v998, %v989
        %v1000 = vsel %vm993, %v996, %v999
        %v1001 = vsel %vm990, nan, %v1000
        %v1002 = vand.u32 2147483647, %v791
        %vm1003 = vcmp.le.f32.partialorder %v1002, 0.7853982
        %vm1004 = vcmp.lt.s32.totalorder %v791, 0
        %v1005 = vand.u32 %v791, 2139095040
        %v1006 = vshrl.u32 %v1005, 23
        %v1007 = vsub.s32 %v1006, 127
        %v1008 = vand.u32 2147483647, %v791
        %v1009 = vand.u32 %v1008, 8388607
        %v1010 = vor.u32 %v1009, 8388608
        %v1011 = vsub.s32 0, %v1010
        %v1012 = vadd.s32 %v1007, 1
        %vm1013 = vcmp.gt.s32.totalorder %v1012, 0
        %v1014 = vsel %vm1013, %v1012, 0
        %v1015 = vshrl.u32 %v1014, 5
        %v1016 = vand.u32 %v1014, 31
        %v1017 = vsub.s32 32, %v1016
        %v1018 = vshrl.u32 683565275, %v1017
        %v1019 = vshll.u32 683565275, %v1016
        %v1020 = vshrl.u32 2475754826, %v1017
        %v1021 = vor.u32 %v1019, %v1020
        %v1022 = vshll.u32 2475754826, %v1016
        %v1023 = vshrl.u32 2131351028, %v1017
        %v1024 = vor.u32 %v1022, %v1023
        %v1025 = vshll.u32 2131351028, %v1016
        %v1026 = vshrl.u32 2102212464, %v1017
        %v1027 = vor.u32 %v1025, %v1026
        %v1028 = vshll.u32 2102212464, %v1016
        %v1029 = vshrl.u32 920167782, %v1017
        %v1030 = vor.u32 %v1028, %v1029
        %v1031 = vshll.u32 920167782, %v1016
        %v1032 = vshrl.u32 1326507024, %v1017
        %v1033 = vor.u32 %v1031, %v1032
        %vm1034 = vcmp.lt.s32.totalorder %v1015, 1
        %vm1035 = vcmp.lt.s32.totalorder %v1015, 2
        %vm1036 = vcmp.lt.s32.totalorder %v1015, 3
        %vm1037 = vcmp.lt.s32.totalorder %v1015, 4
        %v1038 = vsel %vm1034, %v1018, %v1021
        %v1039 = vsel %vm1037, %v1027, 2102212464
        %v1040 = vsel %vm1036, %v1024, %v1039
        %v1041 = vsel %vm1035, %v1038, %v1040
        %v1042 = vsel %vm1034, %v1021, %v1024
        %v1043 = vsel %vm1037, %v1030, 920167782
        %v1044 = vsel %vm1036, %v1027, %v1043
        %v1045 = vsel %vm1035, %v1042, %v1044
        %v1046 = vsel %vm1034, %v1024, %v1027
        %v1047 = vsel %vm1037, %v1033, 1326507024
        %v1048 = vsel %vm1036, %v1030, %v1047
        %v1049 = vsel %vm1035, %v1046, %v1048
        %v1050 = vshll.u32 %v1010, 8
        %v1051 = vmul.u32.u64.compose %v1050, %v1049
        %v1052 = vextract.low.u32 %v1051
        %v1053 = vextract.high.u32 %v1051
        %v1054 = vmul.u32.u64.compose %v1050, %v1045
        %v1055 = vextract.low.u32 %v1054
        %v1056 = vextract.high.u32 %v1054
        %v1057 = vmul.u32 %v1050, %v1041
        %v1058 = vadd.s32 %v1053, %v1055
        %vm1059 = vc.u32 %v1053, %v1055
        %v1060 = vadd.s32 %v1056, 1
        %v1061 = vsel %vm1059, %v1060, %v1056
        %v1062 = vadd.s32 %v1057, %v1061
        %v1063 = vadd.s32 %v1062, 536870912
        %v1064 = vshrl.u32 %v1063, 30
        %v1065 = vshll.u32 %v1064, 30
        %v1066 = vsub.s32 %v1062, %v1065
        %vm1067 = vcmp.lt.s32.totalorder %v1066, 0
        %v1068 = vsub.s32 0, %v1066
        %v1069 = vsel %vm1067, %v1068, %v1066
        %v1070 = vclz %v1069
        %v1071 = vsub.s32 %v1070, 2
        %vm1072 = vcmp.gt.s32.totalorder 0, %v1071
        %v1073 = vsel %vm1072, 0, %v1071
        %v1074 = vsub.s32 32, %v1073
        %v1075 = vshll.u32 %v1066, %v1073
        %v1076 = vshrl.u32 %v1058, %v1074
        %v1077 = vor.u32 %v1075, %v1076
        %v1078 = vsub.s32 4294967266, %v1073
        %v1079 = vadd.s32 %v1078, 127
        %v1080 = vshll.u32 %v1079, 23
        %v1081 = vor.u32 4788187, %v1080
        %v1082 = vand.u32 2147483647, %v1081
        %v1084 = vcvt.s32.f32 %v1077
        %v1085 = vmul.f32 %v1084, %v1082
        %v1086 = vxor.u32 %v1085, 2147483648
        %v1087 = vsel %vm1004, %v1086, %v1085
        %v1088 = vsub.s32 4, %v1064
        %v1089 = vsel %vm1004, %v1088, %v1064
        %v1090 = vsel %vm1003, %v791, %v1087
        %v1091 = vsel %vm1003, 0, %v1089
        %v1092 = vcosq.f32.pop %v1090
        %v1093 = vsinq.f32.pop %v1090
        %vm1094 = vweird.f32 %v791
        %v1095 = vadd.s32 %v1091, 3
        %v1096 = vand.u32 %v1095, 3
        %vm1097 = vcmp.lt.s32.totalorder %v1096, 2
        %vm1098 = vcmp.eq.s32.totalorder %v1096, 0
        %v1099 = vxor.u32 %v1093, 2147483648
        %v1100 = vsel %vm1098, %v1092, %v1099
        %vm1101 = vcmp.eq.s32.totalorder %v1096, 2
        %v1102 = vxor.u32 %v1092, 2147483648
        %v1103 = vsel %vm1101, %v1102, %v1093
        %v1104 = vsel %vm1097, %v1100, %v1103
        %v1105 = vsel %vm1094, nan, %v1104
        %v1106 = vand.u32 2147483647, %v792
        %vm1107 = vcmp.le.f32.partialorder %v1106, 0.7853982
        %vm1108 = vcmp.lt.s32.totalorder %v792, 0
        %v1109 = vand.u32 %v792, 2139095040
        %v1110 = vshrl.u32 %v1109, 23
        %v1111 = vsub.s32 %v1110, 127
        %v1112 = vand.u32 2147483647, %v792
        %v1113 = vand.u32 %v1112, 8388607
        %v1114 = vor.u32 %v1113, 8388608
        %v1115 = vsub.s32 0, %v1114
        %v1116 = vadd.s32 %v1111, 1
        %vm1117 = vcmp.gt.s32.totalorder %v1116, 0
        %v1118 = vsel %vm1117, %v1116, 0
        %v1119 = vshrl.u32 %v1118, 5
        %v1120 = vand.u32 %v1118, 31
        %v1121 = vsub.s32 32, %v1120
        %v1122 = vshrl.u32 683565275, %v1121
        %v1123 = vshll.u32 683565275, %v1120
        %v1124 = vshrl.u32 2475754826, %v1121
        %v1125 = vor.u32 %v1123, %v1124
        %v1126 = vshll.u32 2475754826, %v1120
        %v1127 = vshrl.u32 2131351028, %v1121
        %v1128 = vor.u32 %v1126, %v1127
        %v1129 = vshll.u32 2131351028, %v1120
        %v1130 = vshrl.u32 2102212464, %v1121
        %v1131 = vor.u32 %v1129, %v1130
        %v1132 = vshll.u32 2102212464, %v1120
        %v1133 = vshrl.u32 920167782, %v1121
        %v1134 = vor.u32 %v1132, %v1133
        %v1135 = vshll.u32 920167782, %v1120
        %v1136 = vshrl.u32 1326507024, %v1121
        %v1137 = vor.u32 %v1135, %v1136
        %vm1138 = vcmp.lt.s32.totalorder %v1119, 1
        %vm1139 = vcmp.lt.s32.totalorder %v1119, 2
        %vm1140 = vcmp.lt.s32.totalorder %v1119, 3
        %vm1141 = vcmp.lt.s32.totalorder %v1119, 4
        %v1142 = vsel %vm1138, %v1122, %v1125
        %v1143 = vsel %vm1141, %v1131, 2102212464
        %v1144 = vsel %vm1140, %v1128, %v1143
        %v1145 = vsel %vm1139, %v1142, %v1144
        %v1146 = vsel %vm1138, %v1125, %v1128
        %v1147 = vsel %vm1141, %v1134, 920167782
        %v1148 = vsel %vm1140, %v1131, %v1147
        %v1149 = vsel %vm1139, %v1146, %v1148
        %v1150 = vsel %vm1138, %v1128, %v1131
        %v1151 = vsel %vm1141, %v1137, 1326507024
        %v1152 = vsel %vm1140, %v1134, %v1151
        %v1153 = vsel %vm1139, %v1150, %v1152
        %v1154 = vshll.u32 %v1114, 8
        %v1155 = vmul.u32.u64.compose %v1154, %v1153
        %v1156 = vextract.low.u32 %v1155
        %v1157 = vextract.high.u32 %v1155
        %v1158 = vmul.u32.u64.compose %v1154, %v1149
        %v1159 = vextract.low.u32 %v1158
        %v1160 = vextract.high.u32 %v1158
        %v1161 = vmul.u32 %v1154, %v1145
        %v1162 = vadd.s32 %v1157, %v1159
        %vm1163 = vc.u32 %v1157, %v1159
        %v1164 = vadd.s32 %v1160, 1
        %v1165 = vsel %vm1163, %v1164, %v1160
        %v1166 = vadd.s32 %v1161, %v1165
        %v1167 = vadd.s32 %v1166, 536870912
        %v1168 = vshrl.u32 %v1167, 30
        %v1169 = vshll.u32 %v1168, 30
        %v1170 = vsub.s32 %v1166, %v1169
        %vm1171 = vcmp.lt.s32.totalorder %v1170, 0
        %v1172 = vsub.s32 0, %v1170
        %v1173 = vsel %vm1171, %v1172, %v1170
        %v1174 = vclz %v1173
        %v1175 = vsub.s32 %v1174, 2
        %vm1176 = vcmp.gt.s32.totalorder 0, %v1175
        %v1177 = vsel %vm1176, 0, %v1175
        %v1178 = vsub.s32 32, %v1177
        %v1179 = vshll.u32 %v1170, %v1177
        %v1180 = vshrl.u32 %v1162, %v1178
        %v1181 = vor.u32 %v1179, %v1180
        %v1182 = vsub.s32 4294967266, %v1177
        %v1183 = vadd.s32 %v1182, 127
        %v1184 = vshll.u32 %v1183, 23
        %v1185 = vor.u32 4788187, %v1184
        %v1186 = vand.u32 2147483647, %v1185
        %v1188 = vcvt.s32.f32 %v1181
        %v1189 = vmul.f32 %v1188, %v1186
        %v1190 = vxor.u32 %v1189, 2147483648
        %v1191 = vsel %vm1108, %v1190, %v1189
        %v1192 = vsub.s32 4, %v1168
        %v1193 = vsel %vm1108, %v1192, %v1168
        %v1194 = vsel %vm1107, %v792, %v1191
        %v1195 = vsel %vm1107, 0, %v1193
        %v1196 = vcosq.f32.pop %v1194
        %v1197 = vsinq.f32.pop %v1194
        %vm1198 = vweird.f32 %v792
        %v1199 = vadd.s32 %v1195, 3
        %v1200 = vand.u32 %v1199, 3
        %vm1201 = vcmp.lt.s32.totalorder %v1200, 2
        %vm1202 = vcmp.eq.s32.totalorder %v1200, 0
        %v1203 = vxor.u32 %v1197, 2147483648
        %v1204 = vsel %vm1202, %v1196, %v1203
        %vm1205 = vcmp.eq.s32.totalorder %v1200, 2
        %v1206 = vxor.u32 %v1196, 2147483648
        %v1207 = vsel %vm1205, %v1206, %v1197
        %v1208 = vsel %vm1201, %v1204, %v1207
        %v1209 = vsel %vm1198, nan, %v1208
        %v1210 = vmul.f32 %v897, %v700
        %v1211 = vmul.f32 %v1001, %v702
        %v1212 = vmul.f32 %v1105, %v771
        %v1213 = vmul.f32 %v1209, %v773
        %v1214 = vmul.f32 %v793, 0.06
        %v1216 = vcombine.high %v1214, %v1214
        %v1218 = vunpack.c.l.s4 1983009808
        %v1219 = vunpack.c.0.s8 %v1218
        %v1220 = vlaneseq
        %v1221 = vshrl.u32 %v1220, 7
        %v1222 = vsub.s32 %v1219, %v1221
        %v1223 = vrot.slane %v1214, %v1222
        %v1225 = vunpack.c.l.s4 1983009808
        %v1226 = vunpack.c.0.s8 %v1225
        %v1227 = vlaneseq
        %v1228 = vshrl.u32 %v1227, 7
        %v1229 = vsub.s32 %v1226, %v1228
        %v1230 = vrot.slane %v1216, %v1229
        %v1231 = vcombine.high %v1223, %v1223
        %v1232 = vcombine.high %v1230, %v1230
        %v1237 = vadd.f32 %v1210, %v1223
        %v1238 = vadd.f32 %v1211, %v1231
        %v1239 = vadd.f32 %v1212, %v1230
        %v1240 = vadd.f32 %v1213, %v1232
        %v1241 = vmul.f32 %v793, 0.333
        %v1243 = vcombine.high %v1241, %v1241
        %v1245 = vunpack.c.l.s4 1983009808
        %v1246 = vunpack.c.0.s8 %v1245
        %v1247 = vlaneseq
        %v1248 = vshrl.u32 %v1247, 7
        %v1249 = vsub.s32 %v1246, %v1248
        %v1250 = vrot.slane %v1241, %v1249
        %v1252 = vunpack.c.l.s4 1983009808
        %v1253 = vunpack.c.0.s8 %v1252
        %v1254 = vlaneseq
        %v1255 = vshrl.u32 %v1254, 7
        %v1256 = vsub.s32 %v1253, %v1255
        %v1257 = vrot.slane %v1243, %v1256
        %v1258 = vcombine.high %v1250, %v1250
        %v1259 = vcombine.high %v1257, %v1257
        %v1264 = vsub.f32 %v1237, %v1250
        %v1265 = vsub.f32 %v1238, %v1258
        %v1266 = vsub.f32 %v1239, %v1257
        %v1267 = vsub.f32 %v1240, %v1259
        %v1268 = vmul.f32 %v700, %v1264
        %v1269 = vmul.f32 %v702, %v1265
        %v1270 = vmul.f32 %v771, %v1266
        %v1271 = vmul.f32 %v773, %v1267
        %v1276 = vcombine.low %v1268, %v1269
        %v1277 = vcombine.low %v1270, %v1271
        %v1279 = vunpack.c.l.s4 1983009808
        %v1280 = vunpack.c.0.s8 %v1279
        %v1281 = vlaneseq
        %v1282 = vshrl.u32 %v1281, 7
        %v1283 = vsub.s32 %v1280, %v1282
        %v1284 = vrot.slane %v1276, %v1283
        %v1286 = vunpack.c.l.s4 1983009808
        %v1287 = vunpack.c.0.s8 %v1286
        %v1288 = vlaneseq
        %v1289 = vshrl.u32 %v1288, 7
        %v1290 = vsub.s32 %v1287, %v1289
        %v1291 = vrot.slane %v1277, %v1290
        %v1292 = vcombine.low %v1284, %v1291
        %v1294 = vadd.f32 %v1241, %v1292
        %s1295 = sld [smem:[#allocation12]]
        %v1296 = vstv %s1295
        %v1297 = vmul.f32 %v1296, %v1294
        %v1298 = vmul.f32 %v522, 2.0
        %v1299 = vmul.f32 %v524, 2.0
        %v1300 = vmul.f32 %v593, 2.0
        %v1301 = vmul.f32 %v595, 2.0
        %s1302 = sld [smem:[#allocation11 + $0x1]]
        %v1303 = vstv %s1302
        %v1304 = vadd.f32 %v1298, %v1303
        %v1305 = vadd.f32 %v1299, %v1303
        %v1306 = vadd.f32 %v1300, %v1303
        %v1307 = vadd.f32 %v1301, %v1303
        %v1308 = vfloor.f32 %v1304
        %v1309 = vfloor.f32 %v1305
        %v1310 = vfloor.f32 %v1306
        %v1311 = vfloor.f32 %v1307
        %v1312 = vsub.f32 %v1304, %v1308
        %v1313 = vsub.f32 %v1305, %v1309
        %v1314 = vsub.f32 %v1306, %v1310
        %v1315 = vsub.f32 %v1307, %v1311
        %v1316 = vmul.f32 %v1312, 6.2831855
        %v1317 = vmul.f32 %v1313, 6.2831855
        %v1318 = vmul.f32 %v1314, 6.2831855
        %v1319 = vmul.f32 %v1315, 6.2831855
        %s1320 = scalar_lea.vmem %s364, 8 [#allocation9]
        %v1321 = vld [vmem:[%s1320] sm:$0xff]
        %v1322 = vand.u32 2147483647, %v1316
        %vm1323 = vcmp.le.f32.partialorder %v1322, 0.7853982
        %vm1324 = vcmp.lt.s32.totalorder %v1316, 0
        %v1325 = vand.u32 %v1316, 2139095040
        %v1326 = vshrl.u32 %v1325, 23
        %v1327 = vsub.s32 %v1326, 127
        %v1328 = vand.u32 2147483647, %v1316
        %v1329 = vand.u32 %v1328, 8388607
        %v1330 = vor.u32 %v1329, 8388608
        %v1331 = vsub.s32 0, %v1330
        %v1332 = vadd.s32 %v1327, 1
        %vm1333 = vcmp.gt.s32.totalorder %v1332, 0
        %v1334 = vsel %vm1333, %v1332, 0
        %v1335 = vshrl.u32 %v1334, 5
        %v1336 = vand.u32 %v1334, 31
        %v1337 = vsub.s32 32, %v1336
        %v1338 = vshrl.u32 683565275, %v1337
        %v1339 = vshll.u32 683565275, %v1336
        %v1340 = vshrl.u32 2475754826, %v1337
        %v1341 = vor.u32 %v1339, %v1340
        %v1342 = vshll.u32 2475754826, %v1336
        %v1343 = vshrl.u32 2131351028, %v1337
        %v1344 = vor.u32 %v1342, %v1343
        %v1345 = vshll.u32 2131351028, %v1336
        %v1346 = vshrl.u32 2102212464, %v1337
        %v1347 = vor.u32 %v1345, %v1346
        %v1348 = vshll.u32 2102212464, %v1336
        %v1349 = vshrl.u32 920167782, %v1337
        %v1350 = vor.u32 %v1348, %v1349
        %v1351 = vshll.u32 920167782, %v1336
        %v1352 = vshrl.u32 1326507024, %v1337
        %v1353 = vor.u32 %v1351, %v1352
        %vm1354 = vcmp.lt.s32.totalorder %v1335, 1
        %vm1355 = vcmp.lt.s32.totalorder %v1335, 2
        %vm1356 = vcmp.lt.s32.totalorder %v1335, 3
        %vm1357 = vcmp.lt.s32.totalorder %v1335, 4
        %v1358 = vsel %vm1354, %v1338, %v1341
        %v1359 = vsel %vm1357, %v1347, 2102212464
        %v1360 = vsel %vm1356, %v1344, %v1359
        %v1361 = vsel %vm1355, %v1358, %v1360
        %v1362 = vsel %vm1354, %v1341, %v1344
        %v1363 = vsel %vm1357, %v1350, 920167782
        %v1364 = vsel %vm1356, %v1347, %v1363
        %v1365 = vsel %vm1355, %v1362, %v1364
        %v1366 = vsel %vm1354, %v1344, %v1347
        %v1367 = vsel %vm1357, %v1353, 1326507024
        %v1368 = vsel %vm1356, %v1350, %v1367
        %v1369 = vsel %vm1355, %v1366, %v1368
        %v1370 = vshll.u32 %v1330, 8
        %v1371 = vmul.u32.u64.compose %v1370, %v1369
        %v1372 = vextract.low.u32 %v1371
        %v1373 = vextract.high.u32 %v1371
        %v1374 = vmul.u32.u64.compose %v1370, %v1365
        %v1375 = vextract.low.u32 %v1374
        %v1376 = vextract.high.u32 %v1374
        %v1377 = vmul.u32 %v1370, %v1361
        %v1378 = vadd.s32 %v1373, %v1375
        %vm1379 = vc.u32 %v1373, %v1375
        %v1380 = vadd.s32 %v1376, 1
        %v1381 = vsel %vm1379, %v1380, %v1376
        %v1382 = vadd.s32 %v1377, %v1381
        %v1383 = vadd.s32 %v1382, 536870912
        %v1384 = vshrl.u32 %v1383, 30
        %v1385 = vshll.u32 %v1384, 30
        %v1386 = vsub.s32 %v1382, %v1385
        %vm1387 = vcmp.lt.s32.totalorder %v1386, 0
        %v1388 = vsub.s32 0, %v1386
        %v1389 = vsel %vm1387, %v1388, %v1386
        %v1390 = vclz %v1389
        %v1391 = vsub.s32 %v1390, 2
        %vm1392 = vcmp.gt.s32.totalorder 0, %v1391
        %v1393 = vsel %vm1392, 0, %v1391
        %v1394 = vsub.s32 32, %v1393
        %v1395 = vshll.u32 %v1386, %v1393
        %v1396 = vshrl.u32 %v1378, %v1394
        %v1397 = vor.u32 %v1395, %v1396
        %v1398 = vsub.s32 4294967266, %v1393
        %v1399 = vadd.s32 %v1398, 127
        %v1400 = vshll.u32 %v1399, 23
        %v1401 = vor.u32 4788187, %v1400
        %v1402 = vand.u32 2147483647, %v1401
        %v1404 = vcvt.s32.f32 %v1397
        %v1405 = vmul.f32 %v1404, %v1402
        %v1406 = vxor.u32 %v1405, 2147483648
        %v1407 = vsel %vm1324, %v1406, %v1405
        %v1408 = vsub.s32 4, %v1384
        %v1409 = vsel %vm1324, %v1408, %v1384
        %v1410 = vsel %vm1323, %v1316, %v1407
        %v1411 = vsel %vm1323, 0, %v1409
        %v1412 = vcosq.f32.pop %v1410
        %v1413 = vsinq.f32.pop %v1410
        %vm1414 = vweird.f32 %v1316
        %v1415 = vadd.s32 %v1411, 3
        %v1416 = vand.u32 %v1415, 3
        %vm1417 = vcmp.lt.s32.totalorder %v1416, 2
        %vm1418 = vcmp.eq.s32.totalorder %v1416, 0
        %v1419 = vxor.u32 %v1413, 2147483648
        %v1420 = vsel %vm1418, %v1412, %v1419
        %vm1421 = vcmp.eq.s32.totalorder %v1416, 2
        %v1422 = vxor.u32 %v1412, 2147483648
        %v1423 = vsel %vm1421, %v1422, %v1413
        %v1424 = vsel %vm1417, %v1420, %v1423
        %v1425 = vsel %vm1414, nan, %v1424
        %v1426 = vand.u32 2147483647, %v1317
        %vm1427 = vcmp.le.f32.partialorder %v1426, 0.7853982
        %vm1428 = vcmp.lt.s32.totalorder %v1317, 0
        %v1429 = vand.u32 %v1317, 2139095040
        %v1430 = vshrl.u32 %v1429, 23
        %v1431 = vsub.s32 %v1430, 127
        %v1432 = vand.u32 2147483647, %v1317
        %v1433 = vand.u32 %v1432, 8388607
        %v1434 = vor.u32 %v1433, 8388608
        %v1435 = vsub.s32 0, %v1434
        %v1436 = vadd.s32 %v1431, 1
        %vm1437 = vcmp.gt.s32.totalorder %v1436, 0
        %v1438 = vsel %vm1437, %v1436, 0
        %v1439 = vshrl.u32 %v1438, 5
        %v1440 = vand.u32 %v1438, 31
        %v1441 = vsub.s32 32, %v1440
        %v1442 = vshrl.u32 683565275, %v1441
        %v1443 = vshll.u32 683565275, %v1440
        %v1444 = vshrl.u32 2475754826, %v1441
        %v1445 = vor.u32 %v1443, %v1444
        %v1446 = vshll.u32 2475754826, %v1440
        %v1447 = vshrl.u32 2131351028, %v1441
        %v1448 = vor.u32 %v1446, %v1447
        %v1449 = vshll.u32 2131351028, %v1440
        %v1450 = vshrl.u32 2102212464, %v1441
        %v1451 = vor.u32 %v1449, %v1450
        %v1452 = vshll.u32 2102212464, %v1440
        %v1453 = vshrl.u32 920167782, %v1441
        %v1454 = vor.u32 %v1452, %v1453
        %v1455 = vshll.u32 920167782, %v1440
        %v1456 = vshrl.u32 1326507024, %v1441
        %v1457 = vor.u32 %v1455, %v1456
        %vm1458 = vcmp.lt.s32.totalorder %v1439, 1
        %vm1459 = vcmp.lt.s32.totalorder %v1439, 2
        %vm1460 = vcmp.lt.s32.totalorder %v1439, 3
        %vm1461 = vcmp.lt.s32.totalorder %v1439, 4
        %v1462 = vsel %vm1458, %v1442, %v1445
        %v1463 = vsel %vm1461, %v1451, 2102212464
        %v1464 = vsel %vm1460, %v1448, %v1463
        %v1465 = vsel %vm1459, %v1462, %v1464
        %v1466 = vsel %vm1458, %v1445, %v1448
        %v1467 = vsel %vm1461, %v1454, 920167782
        %v1468 = vsel %vm1460, %v1451, %v1467
        %v1469 = vsel %vm1459, %v1466, %v1468
        %v1470 = vsel %vm1458, %v1448, %v1451
        %v1471 = vsel %vm1461, %v1457, 1326507024
        %v1472 = vsel %vm1460, %v1454, %v1471
        %v1473 = vsel %vm1459, %v1470, %v1472
        %v1474 = vshll.u32 %v1434, 8
        %v1475 = vmul.u32.u64.compose %v1474, %v1473
        %v1476 = vextract.low.u32 %v1475
        %v1477 = vextract.high.u32 %v1475
        %v1478 = vmul.u32.u64.compose %v1474, %v1469
        %v1479 = vextract.low.u32 %v1478
        %v1480 = vextract.high.u32 %v1478
        %v1481 = vmul.u32 %v1474, %v1465
        %v1482 = vadd.s32 %v1477, %v1479
        %vm1483 = vc.u32 %v1477, %v1479
        %v1484 = vadd.s32 %v1480, 1
        %v1485 = vsel %vm1483, %v1484, %v1480
        %v1486 = vadd.s32 %v1481, %v1485
        %v1487 = vadd.s32 %v1486, 536870912
        %v1488 = vshrl.u32 %v1487, 30
        %v1489 = vshll.u32 %v1488, 30
        %v1490 = vsub.s32 %v1486, %v1489
        %vm1491 = vcmp.lt.s32.totalorder %v1490, 0
        %v1492 = vsub.s32 0, %v1490
        %v1493 = vsel %vm1491, %v1492, %v1490
        %v1494 = vclz %v1493
        %v1495 = vsub.s32 %v1494, 2
        %vm1496 = vcmp.gt.s32.totalorder 0, %v1495
        %v1497 = vsel %vm1496, 0, %v1495
        %v1498 = vsub.s32 32, %v1497
        %v1499 = vshll.u32 %v1490, %v1497
        %v1500 = vshrl.u32 %v1482, %v1498
        %v1501 = vor.u32 %v1499, %v1500
        %v1502 = vsub.s32 4294967266, %v1497
        %v1503 = vadd.s32 %v1502, 127
        %v1504 = vshll.u32 %v1503, 23
        %v1505 = vor.u32 4788187, %v1504
        %v1506 = vand.u32 2147483647, %v1505
        %v1508 = vcvt.s32.f32 %v1501
        %v1509 = vmul.f32 %v1508, %v1506
        %v1510 = vxor.u32 %v1509, 2147483648
        %v1511 = vsel %vm1428, %v1510, %v1509
        %v1512 = vsub.s32 4, %v1488
        %v1513 = vsel %vm1428, %v1512, %v1488
        %v1514 = vsel %vm1427, %v1317, %v1511
        %v1515 = vsel %vm1427, 0, %v1513
        %v1516 = vcosq.f32.pop %v1514
        %v1517 = vsinq.f32.pop %v1514
        %vm1518 = vweird.f32 %v1317
        %v1519 = vadd.s32 %v1515, 3
        %v1520 = vand.u32 %v1519, 3
        %vm1521 = vcmp.lt.s32.totalorder %v1520, 2
        %vm1522 = vcmp.eq.s32.totalorder %v1520, 0
        %v1523 = vxor.u32 %v1517, 2147483648
        %v1524 = vsel %vm1522, %v1516, %v1523
        %vm1525 = vcmp.eq.s32.totalorder %v1520, 2
        %v1526 = vxor.u32 %v1516, 2147483648
        %v1527 = vsel %vm1525, %v1526, %v1517
        %v1528 = vsel %vm1521, %v1524, %v1527
        %v1529 = vsel %vm1518, nan, %v1528
        %v1530 = vand.u32 2147483647, %v1318
        %vm1531 = vcmp.le.f32.partialorder %v1530, 0.7853982
        %vm1532 = vcmp.lt.s32.totalorder %v1318, 0
        %v1533 = vand.u32 %v1318, 2139095040
        %v1534 = vshrl.u32 %v1533, 23
        %v1535 = vsub.s32 %v1534, 127
        %v1536 = vand.u32 2147483647, %v1318
        %v1537 = vand.u32 %v1536, 8388607
        %v1538 = vor.u32 %v1537, 8388608
        %v1539 = vsub.s32 0, %v1538
        %v1540 = vadd.s32 %v1535, 1
        %vm1541 = vcmp.gt.s32.totalorder %v1540, 0
        %v1542 = vsel %vm1541, %v1540, 0
        %v1543 = vshrl.u32 %v1542, 5
        %v1544 = vand.u32 %v1542, 31
        %v1545 = vsub.s32 32, %v1544
        %v1546 = vshrl.u32 683565275, %v1545
        %v1547 = vshll.u32 683565275, %v1544
        %v1548 = vshrl.u32 2475754826, %v1545
        %v1549 = vor.u32 %v1547, %v1548
        %v1550 = vshll.u32 2475754826, %v1544
        %v1551 = vshrl.u32 2131351028, %v1545
        %v1552 = vor.u32 %v1550, %v1551
        %v1553 = vshll.u32 2131351028, %v1544
        %v1554 = vshrl.u32 2102212464, %v1545
        %v1555 = vor.u32 %v1553, %v1554
        %v1556 = vshll.u32 2102212464, %v1544
        %v1557 = vshrl.u32 920167782, %v1545
        %v1558 = vor.u32 %v1556, %v1557
        %v1559 = vshll.u32 920167782, %v1544
        %v1560 = vshrl.u32 1326507024, %v1545
        %v1561 = vor.u32 %v1559, %v1560
        %vm1562 = vcmp.lt.s32.totalorder %v1543, 1
        %vm1563 = vcmp.lt.s32.totalorder %v1543, 2
        %vm1564 = vcmp.lt.s32.totalorder %v1543, 3
        %vm1565 = vcmp.lt.s32.totalorder %v1543, 4
        %v1566 = vsel %vm1562, %v1546, %v1549
        %v1567 = vsel %vm1565, %v1555, 2102212464
        %v1568 = vsel %vm1564, %v1552, %v1567
        %v1569 = vsel %vm1563, %v1566, %v1568
        %v1570 = vsel %vm1562, %v1549, %v1552
        %v1571 = vsel %vm1565, %v1558, 920167782
        %v1572 = vsel %vm1564, %v1555, %v1571
        %v1573 = vsel %vm1563, %v1570, %v1572
        %v1574 = vsel %vm1562, %v1552, %v1555
        %v1575 = vsel %vm1565, %v1561, 1326507024
        %v1576 = vsel %vm1564, %v1558, %v1575
        %v1577 = vsel %vm1563, %v1574, %v1576
        %v1578 = vshll.u32 %v1538, 8
        %v1579 = vmul.u32.u64.compose %v1578, %v1577
        %v1580 = vextract.low.u32 %v1579
        %v1581 = vextract.high.u32 %v1579
        %v1582 = vmul.u32.u64.compose %v1578, %v1573
        %v1583 = vextract.low.u32 %v1582
        %v1584 = vextract.high.u32 %v1582
        %v1585 = vmul.u32 %v1578, %v1569
        %v1586 = vadd.s32 %v1581, %v1583
        %vm1587 = vc.u32 %v1581, %v1583
        %v1588 = vadd.s32 %v1584, 1
        %v1589 = vsel %vm1587, %v1588, %v1584
        %v1590 = vadd.s32 %v1585, %v1589
        %v1591 = vadd.s32 %v1590, 536870912
        %v1592 = vshrl.u32 %v1591, 30
        %v1593 = vshll.u32 %v1592, 30
        %v1594 = vsub.s32 %v1590, %v1593
        %vm1595 = vcmp.lt.s32.totalorder %v1594, 0
        %v1596 = vsub.s32 0, %v1594
        %v1597 = vsel %vm1595, %v1596, %v1594
        %v1598 = vclz %v1597
        %v1599 = vsub.s32 %v1598, 2
        %vm1600 = vcmp.gt.s32.totalorder 0, %v1599
        %v1601 = vsel %vm1600, 0, %v1599
        %v1602 = vsub.s32 32, %v1601
        %v1603 = vshll.u32 %v1594, %v1601
        %v1604 = vshrl.u32 %v1586, %v1602
        %v1605 = vor.u32 %v1603, %v1604
        %v1606 = vsub.s32 4294967266, %v1601
        %v1607 = vadd.s32 %v1606, 127
        %v1608 = vshll.u32 %v1607, 23
        %v1609 = vor.u32 4788187, %v1608
        %v1610 = vand.u32 2147483647, %v1609
        %v1612 = vcvt.s32.f32 %v1605
        %v1613 = vmul.f32 %v1612, %v1610
        %v1614 = vxor.u32 %v1613, 2147483648
        %v1615 = vsel %vm1532, %v1614, %v1613
        %v1616 = vsub.s32 4, %v1592
        %v1617 = vsel %vm1532, %v1616, %v1592
        %v1618 = vsel %vm1531, %v1318, %v1615
        %v1619 = vsel %vm1531, 0, %v1617
        %v1620 = vcosq.f32.pop %v1618
        %v1621 = vsinq.f32.pop %v1618
        %vm1622 = vweird.f32 %v1318
        %v1623 = vadd.s32 %v1619, 3
        %v1624 = vand.u32 %v1623, 3
        %vm1625 = vcmp.lt.s32.totalorder %v1624, 2
        %vm1626 = vcmp.eq.s32.totalorder %v1624, 0
        %v1627 = vxor.u32 %v1621, 2147483648
        %v1628 = vsel %vm1626, %v1620, %v1627
        %vm1629 = vcmp.eq.s32.totalorder %v1624, 2
        %v1630 = vxor.u32 %v1620, 2147483648
        %v1631 = vsel %vm1629, %v1630, %v1621
        %v1632 = vsel %vm1625, %v1628, %v1631
        %v1633 = vsel %vm1622, nan, %v1632
        %v1634 = vand.u32 2147483647, %v1319
        %vm1635 = vcmp.le.f32.partialorder %v1634, 0.7853982
        %vm1636 = vcmp.lt.s32.totalorder %v1319, 0
        %v1637 = vand.u32 %v1319, 2139095040
        %v1638 = vshrl.u32 %v1637, 23
        %v1639 = vsub.s32 %v1638, 127
        %v1640 = vand.u32 2147483647, %v1319
        %v1641 = vand.u32 %v1640, 8388607
        %v1642 = vor.u32 %v1641, 8388608
        %v1643 = vsub.s32 0, %v1642
        %v1644 = vadd.s32 %v1639, 1
        %vm1645 = vcmp.gt.s32.totalorder %v1644, 0
        %v1646 = vsel %vm1645, %v1644, 0
        %v1647 = vshrl.u32 %v1646, 5
        %v1648 = vand.u32 %v1646, 31
        %v1649 = vsub.s32 32, %v1648
        %v1650 = vshrl.u32 683565275, %v1649
        %v1651 = vshll.u32 683565275, %v1648
        %v1652 = vshrl.u32 2475754826, %v1649
        %v1653 = vor.u32 %v1651, %v1652
        %v1654 = vshll.u32 2475754826, %v1648
        %v1655 = vshrl.u32 2131351028, %v1649
        %v1656 = vor.u32 %v1654, %v1655
        %v1657 = vshll.u32 2131351028, %v1648
        %v1658 = vshrl.u32 2102212464, %v1649
        %v1659 = vor.u32 %v1657, %v1658
        %v1660 = vshll.u32 2102212464, %v1648
        %v1661 = vshrl.u32 920167782, %v1649
        %v1662 = vor.u32 %v1660, %v1661
        %v1663 = vshll.u32 920167782, %v1648
        %v1664 = vshrl.u32 1326507024, %v1649
        %v1665 = vor.u32 %v1663, %v1664
        %vm1666 = vcmp.lt.s32.totalorder %v1647, 1
        %vm1667 = vcmp.lt.s32.totalorder %v1647, 2
        %vm1668 = vcmp.lt.s32.totalorder %v1647, 3
        %vm1669 = vcmp.lt.s32.totalorder %v1647, 4
        %v1670 = vsel %vm1666, %v1650, %v1653
        %v1671 = vsel %vm1669, %v1659, 2102212464
        %v1672 = vsel %vm1668, %v1656, %v1671
        %v1673 = vsel %vm1667, %v1670, %v1672
        %v1674 = vsel %vm1666, %v1653, %v1656
        %v1675 = vsel %vm1669, %v1662, 920167782
        %v1676 = vsel %vm1668, %v1659, %v1675
        %v1677 = vsel %vm1667, %v1674, %v1676
        %v1678 = vsel %vm1666, %v1656, %v1659
        %v1679 = vsel %vm1669, %v1665, 1326507024
        %v1680 = vsel %vm1668, %v1662, %v1679
        %v1681 = vsel %vm1667, %v1678, %v1680
        %v1682 = vshll.u32 %v1642, 8
        %v1683 = vmul.u32.u64.compose %v1682, %v1681
        %v1684 = vextract.low.u32 %v1683
        %v1685 = vextract.high.u32 %v1683
        %v1686 = vmul.u32.u64.compose %v1682, %v1677
        %v1687 = vextract.low.u32 %v1686
        %v1688 = vextract.high.u32 %v1686
        %v1689 = vmul.u32 %v1682, %v1673
        %v1690 = vadd.s32 %v1685, %v1687
        %vm1691 = vc.u32 %v1685, %v1687
        %v1692 = vadd.s32 %v1688, 1
        %v1693 = vsel %vm1691, %v1692, %v1688
        %v1694 = vadd.s32 %v1689, %v1693
        %v1695 = vadd.s32 %v1694, 536870912
        %v1696 = vshrl.u32 %v1695, 30
        %v1697 = vshll.u32 %v1696, 30
        %v1698 = vsub.s32 %v1694, %v1697
        %vm1699 = vcmp.lt.s32.totalorder %v1698, 0
        %v1700 = vsub.s32 0, %v1698
        %v1701 = vsel %vm1699, %v1700, %v1698
        %v1702 = vclz %v1701
        %v1703 = vsub.s32 %v1702, 2
        %vm1704 = vcmp.gt.s32.totalorder 0, %v1703
        %v1705 = vsel %vm1704, 0, %v1703
        %v1706 = vsub.s32 32, %v1705
        %v1707 = vshll.u32 %v1698, %v1705
        %v1708 = vshrl.u32 %v1690, %v1706
        %v1709 = vor.u32 %v1707, %v1708
        %v1710 = vsub.s32 4294967266, %v1705
        %v1711 = vadd.s32 %v1710, 127
        %v1712 = vshll.u32 %v1711, 23
        %v1713 = vor.u32 4788187, %v1712
        %v1714 = vand.u32 2147483647, %v1713
        %v1716 = vcvt.s32.f32 %v1709
        %v1717 = vmul.f32 %v1716, %v1714
        %v1718 = vxor.u32 %v1717, 2147483648
        %v1719 = vsel %vm1636, %v1718, %v1717
        %v1720 = vsub.s32 4, %v1696
        %v1721 = vsel %vm1636, %v1720, %v1696
        %v1722 = vsel %vm1635, %v1319, %v1719
        %v1723 = vsel %vm1635, 0, %v1721
        %v1724 = vcosq.f32.pop %v1722
        %v1725 = vsinq.f32.pop %v1722
        %vm1726 = vweird.f32 %v1319
        %v1727 = vadd.s32 %v1723, 3
        %v1728 = vand.u32 %v1727, 3
        %vm1729 = vcmp.lt.s32.totalorder %v1728, 2
        %vm1730 = vcmp.eq.s32.totalorder %v1728, 0
        %v1731 = vxor.u32 %v1725, 2147483648
        %v1732 = vsel %vm1730, %v1724, %v1731
        %vm1733 = vcmp.eq.s32.totalorder %v1728, 2
        %v1734 = vxor.u32 %v1724, 2147483648
        %v1735 = vsel %vm1733, %v1734, %v1725
        %v1736 = vsel %vm1729, %v1732, %v1735
        %v1737 = vsel %vm1726, nan, %v1736
        %v1738 = vmul.f32 %v1425, %v700
        %v1739 = vmul.f32 %v1529, %v702
        %v1740 = vmul.f32 %v1633, %v771
        %v1741 = vmul.f32 %v1737, %v773
        %v1742 = vmul.f32 %v1321, 0.06
        %v1744 = vcombine.high %v1742, %v1742
        %v1746 = vunpack.c.l.s4 1983009808
        %v1747 = vunpack.c.0.s8 %v1746
        %v1748 = vlaneseq
        %v1749 = vshrl.u32 %v1748, 7
        %v1750 = vsub.s32 %v1747, %v1749
        %v1751 = vrot.slane %v1742, %v1750
        %v1753 = vunpack.c.l.s4 1983009808
        %v1754 = vunpack.c.0.s8 %v1753
        %v1755 = vlaneseq
        %v1756 = vshrl.u32 %v1755, 7
        %v1757 = vsub.s32 %v1754, %v1756
        %v1758 = vrot.slane %v1744, %v1757
        %v1759 = vcombine.high %v1751, %v1751
        %v1760 = vcombine.high %v1758, %v1758
        %v1765 = vadd.f32 %v1738, %v1751
        %v1766 = vadd.f32 %v1739, %v1759
        %v1767 = vadd.f32 %v1740, %v1758
        %v1768 = vadd.f32 %v1741, %v1760
        %v1769 = vmul.f32 %v1321, 0.333
        %v1771 = vcombine.high %v1769, %v1769
        %v1773 = vunpack.c.l.s4 1983009808
        %v1774 = vunpack.c.0.s8 %v1773
        %v1775 = vlaneseq
        %v1776 = vshrl.u32 %v1775, 7
        %v1777 = vsub.s32 %v1774, %v1776
        %v1778 = vrot.slane %v1769, %v1777
        %v1780 = vunpack.c.l.s4 1983009808
        %v1781 = vunpack.c.0.s8 %v1780
        %v1782 = vlaneseq
        %v1783 = vshrl.u32 %v1782, 7
        %v1784 = vsub.s32 %v1781, %v1783
        %v1785 = vrot.slane %v1771, %v1784
        %v1786 = vcombine.high %v1778, %v1778
        %v1787 = vcombine.high %v1785, %v1785
        %v1792 = vsub.f32 %v1765, %v1778
        %v1793 = vsub.f32 %v1766, %v1786
        %v1794 = vsub.f32 %v1767, %v1785
        %v1795 = vsub.f32 %v1768, %v1787
        %v1796 = vmul.f32 %v700, %v1792
        %v1797 = vmul.f32 %v702, %v1793
        %v1798 = vmul.f32 %v771, %v1794
        %v1799 = vmul.f32 %v773, %v1795
        %v1804 = vcombine.low %v1796, %v1797
        %v1805 = vcombine.low %v1798, %v1799
        %v1807 = vunpack.c.l.s4 1983009808
        %v1808 = vunpack.c.0.s8 %v1807
        %v1809 = vlaneseq
        %v1810 = vshrl.u32 %v1809, 7
        %v1811 = vsub.s32 %v1808, %v1810
        %v1812 = vrot.slane %v1804, %v1811
        %v1814 = vunpack.c.l.s4 1983009808
        %v1815 = vunpack.c.0.s8 %v1814
        %v1816 = vlaneseq
        %v1817 = vshrl.u32 %v1816, 7
        %v1818 = vsub.s32 %v1815, %v1817
        %v1819 = vrot.slane %v1805, %v1818
        %v1820 = vcombine.low %v1812, %v1819
        %v1822 = vadd.f32 %v1769, %v1820
        %s1823 = sld [smem:[#allocation12 + $0x1]]
        %v1824 = vstv %s1823
        %v1825 = vmul.f32 %v1824, %v1822
        %v1826 = vadd.f32 %v1297, %v1825
        %1827 = vst [vmem:[%s413] sm:$0xff] %v1826
        %s1828 = sand.u32 %s200, 1
        %s1829 = scalar_lea.sflag [#allocation4], %s1828
        %s1830 = sand.u32 %s200, 1
        %s1831 = smul.addr %s1830, 8
        %s1832 = scalar_lea.vmem [#allocation14], %s1831
        // Predicated region
        $region73: #{tpu_custom_call.1} parent=47 // pred_check
          %p1833 = pneg %p210
        $region74: #{tpu_custom_call.1} parent=47 // pred_check_branch
          %1835 = sbr.rel (%p1833) target = $region76
        $region75: #{tpu_custom_call.1} parent=47 // pred_region
          %s1836 = smul.u32 4, %s30
          %s1838 = ssub.s32 128, 128
          %1839 = vsyncadd %s1829, %s1838
          %s1840 = smul.addr %s1836, 32
          %s1841 = scalar_lea.hbm %s7, %s1840
          %s1843 = sshll.u32 %s1832, 4
          %s1844 = int_to_ptr.vmem [resolvable:$true] %s1843
          %1846 = dma.vmem_to_hbm [thread:$0]  %s1844, 128, %s1841, %s1829
        $region76: #{tpu_custom_call.1} parent=47 // pred_fallthru
          _
      $region48: #{tpu_custom_call.1} parent=5 // pred_fallthru
        _
      %p1847 = scmp.le.s32.totalorder 2, %s25
      // Predicated region
      $region77: #{tpu_custom_call.1} parent=5 // pred_check
        %p1848 = pneg %p1847
      $region78: #{tpu_custom_call.1} parent=5 // pred_check_branch
        %1850 = sbr.rel (%p1848) target = $region80
      $region79: #{tpu_custom_call.1} parent=5 // pred_region
        %s1851 = ssub.s32 %s25, 2
        // Predicated region
        $region81: #{tpu_custom_call.1} parent=79 // pred_check
          %p1852 = pneg %p216
        $region82: #{tpu_custom_call.1} parent=79 // pred_check_branch
          %1854 = sbr.rel (%p1852) target = $region84
        $region83: #{tpu_custom_call.1} parent=79 // pred_region
          %s1855 = sand.u32 %s201, 1
          %s1856 = scalar_lea.sflag [#allocation4], %s1855
          %s1857 = sand.u32 %s201, 1
          %s1858 = smul.addr %s1857, 8
          %s1859 = scalar_lea.vmem [#allocation14], %s1858
          %1860 = dma.done %s1856, 128
        $region84: #{tpu_custom_call.1} parent=79 // pred_fallthru
          _
      $region80: #{tpu_custom_call.1} parent=5 // pred_fallthru
        _
    $region6: #{tpu_custom_call.1} parent=1 // loop_footer
      %s29 = sadd.s32 1, %s25
    $region7: #{tpu_custom_call.1} parent=1 // loop_footer_branch
      %24 = sbr.rel target = $region3
    $region8: #{tpu_custom_call.1} parent=1 // loop_exit
      _
    %1861 = vsyncpa [#allocation3], 1
    %s1862 = scalar_lea.sflag [#allocation3], 1
    %1863 = vsyncpa %s1862, 1
    %1864 = vsyncpa [#allocation7], 1
    %s1865 = scalar_lea.sflag [#allocation7], 1
    %1866 = vsyncpa %s1865, 1
    %1867 = vsyncpa [#allocation10], 1
    %s1868 = scalar_lea.sflag [#allocation10], 1
    %1869 = vsyncpa %s1868, 1
    %1870 = vsyncpa [#allocation4], 1
    %s1871 = scalar_lea.sflag [#allocation4], 1
    %1872 = vsyncpa %s1871, 1
    %1873 = vsyncpa [#allocation5], 1
    %s1874 = scalar_lea.sflag [#allocation5], 1
    %1875 = vsyncpa %s1874, 1
    %1876 = vsyncpa [#allocation13], 1

</llo_original>
